<compile_context>
chip_gen: v5e
topology: v5e:2x2
jax: 0.10.0
libtpu: 0.0.40
codegen_flags: <defaults>
</compile_context>

<pallas_src>
import functools

import jax
import jax.numpy as jnp
from jax.experimental import pallas as pl
from jax.experimental.pallas import tpu as pltpu

_LANE = 128
_SUBLANE_BF16 = 16          # bf16 packs 16 rows per vreg sublane group
_NEG_SLOPE = 0.01           # PyTorch nn.LeakyReLU default negative_slope


def _round_up(n, m):
    return ((n + m - 1) // m) * m


def _mlp_kernel(x_ref, w1_ref, b1_ref, w2_ref, b2_ref, w3_ref, b3_ref,
                o_ref, h_ref):
    """Fused 3-layer MLP. Grid = (batch tiles i, out-dim tiles j).

    Layers 1-2 depend only on the batch tile i, so they run once per batch
    tile (guarded by j == 0) and their bf16 result is parked in the VMEM
    scratch h_ref, which persists across the inner j axis.  Layer 3 is
    N-tiled: each j step multiplies h against one (mid, TN) slice of W3.
    Matmuls run on the MXU with bf16 operands / f32 accumulation; bias adds,
    LeakyReLU and tanh stay in f32 on the VPU/EUP.
    """
    j = pl.program_id(1)
    neg = jnp.float32(_NEG_SLOPE)

    @pl.when(j == 0)
    def _():
        # Layer 1: Linear + LeakyReLU
        h = jnp.dot(x_ref[...], w1_ref[...], preferred_element_type=jnp.float32)
        h = h + b1_ref[...]
        h = jnp.maximum(h, neg * h)              # single VPU max
        # Layer 2: Linear + LeakyReLU (flows straight from layer 1)
        h = jnp.dot(h.astype(jnp.bfloat16), w2_ref[...],
                    preferred_element_type=jnp.float32)
        h = h + b2_ref[...]
        h = jnp.maximum(h, neg * h)
        h_ref[...] = h.astype(h_ref.dtype)       # persists across j

    # Layer 3 (this out_dim tile): Linear + Tanh
    y = jnp.dot(h_ref[...], w3_ref[...], preferred_element_type=jnp.float32)
    y = y + b3_ref[...]
    o_ref[...] = jnp.tanh(y).astype(o_ref.dtype)


@functools.partial(jax.jit, static_argnames=("block_b", "block_n"))
def _generator0_pallas(x, w1, b1, w2, b2, w3, b3, block_b, block_n):
    Bp, in_pad = x.shape
    mid_pad = w1.shape[1]
    out_pad = w3.shape[1]
    grid = (Bp // block_b, out_pad // block_n)

    # VMEM budget: every BlockSpec operand is double-buffered by default;
    # the h scratch is single.  Leave ~50% headroom, cap at physical VMEM.
    vmem_bytes = 2 * (
        block_b * in_pad * 2          # x tile (bf16)
        + in_pad * mid_pad * 2        # W1 (bf16, resident)
        + mid_pad * 4                 # b1 (f32)
        + mid_pad * mid_pad * 2       # W2 (bf16, resident)
        + mid_pad * 4                 # b2 (f32)
        + mid_pad * block_n * 2       # W3 tile (bf16)
        + block_n * 4                 # b3 tile (f32)
        + block_b * block_n * 4       # out tile (f32)
    ) + block_b * mid_pad * 2         # h scratch (bf16)
    vmem_limit = min(int(vmem_bytes * 1.5) + (2 << 20), 64 << 20)

    flops = 2 * Bp * (in_pad * mid_pad + mid_pad * mid_pad + mid_pad * out_pad)
    bytes_accessed = (Bp * in_pad * 2 + in_pad * mid_pad * 2
                      + mid_pad * mid_pad * 2 + mid_pad * out_pad * 2
                      + Bp * out_pad * 4)

    return pl.pallas_call(
        _mlp_kernel,
        out_shape=jax.ShapeDtypeStruct((Bp, out_pad), jnp.float32),
        grid_spec=pltpu.PrefetchScalarGridSpec(
            num_scalar_prefetch=0,
            grid=grid,
            in_specs=[
                pl.BlockSpec((block_b, in_pad), lambda i, j: (i, 0)),    # x tile
                pl.BlockSpec((in_pad, mid_pad), lambda i, j: (0, 0)),    # W1
                pl.BlockSpec((1, mid_pad), lambda i, j: (0, 0)),         # b1
                pl.BlockSpec((mid_pad, mid_pad), lambda i, j: (0, 0)),   # W2
                pl.BlockSpec((1, mid_pad), lambda i, j: (0, 0)),         # b2
                pl.BlockSpec((mid_pad, block_n), lambda i, j: (0, j)),   # W3 tile
                pl.BlockSpec((1, block_n), lambda i, j: (0, j)),         # b3 tile
            ],
            out_specs=pl.BlockSpec((block_b, block_n), lambda i, j: (i, j)),
            scratch_shapes=[pltpu.VMEM((block_b, mid_pad), jnp.bfloat16)],
        ),
        compiler_params=pltpu.CompilerParams(
            dimension_semantics=("parallel", "arbitrary"),
            vmem_limit_bytes=vmem_limit,
        ),
        cost_estimate=pl.CostEstimate(
            flops=flops,
            transcendentals=Bp * out_pad,
            bytes_accessed=bytes_accessed,
        ),
    )(x, w1, b1, w2, b2, w3, b3)


def prepare_generator0_params(w1, b1, w2, b2, w3, b3, block_n_max=1024):
    """Pad to lane/MXU-friendly shapes and cast weights to bf16 ONCE.

    wK: (fan_in, fan_out) f32;  bK: (fan_out,) or (1, fan_out) f32.
    Do this at parameter setup, not per forward call (saves ~60 MiB of HBM
    cast traffic per call at real Generator0 sizes).
    """
    in_dim, mid_dim = w1.shape
    out_dim = w3.shape[1]

    in_pad = _round_up(in_dim, _LANE)
    mid_pad = _round_up(mid_dim, _LANE)
    block_n = min(block_n_max, _round_up(out_dim, _LANE))
    out_pad = _round_up(out_dim, block_n)

    def pad2(a, rows, cols, dtype):
        buf = jnp.zeros((rows, cols), dtype)
        return buf.at[: a.shape[0], : a.shape[1]].set(a.astype(dtype))

    b1 = jnp.reshape(b1, (1, -1))
    b2 = jnp.reshape(b2, (1, -1))
    b3 = jnp.reshape(b3, (1, -1))

    return dict(
        w1=pad2(w1, in_pad, mid_pad, jnp.bfloat16),
        b1=pad2(b1, 1, mid_pad, jnp.float32),
        w2=pad2(w2, mid_pad, mid_pad, jnp.bfloat16),
        b2=pad2(b2, 1, mid_pad, jnp.float32),
        w3=pad2(w3, mid_pad, out_pad, jnp.bfloat16),
        b3=pad2(b3, 1, out_pad, jnp.float32),
        in_dim=in_dim, out_dim=out_dim, in_pad=in_pad, block_n=block_n,
    )


def generator0_forward(x, params, block_b=None):
    """Forward pass: tanh(leaky(leaky(x@W1+b1)@W2+b2)@W3+b3).

    x : (B, in_dim) float32;  params: output of prepare_generator0_params.
    Returns (B, out_dim) float32.
    """
    B, in_dim = x.shape
    assert in_dim == params["in_dim"]
    in_pad = params["in_pad"]
    block_n = params["block_n"]
    out_dim = params["out_dim"]

    if block_b is None:
        if B <= _SUBLANE_BF16:
            block_b = _SUBLANE_BF16
        elif B <= 512:
            # >= 2 batch tiles so the 'parallel' axis spans both v7x TCs.
            block_b = _round_up(-(-B // 2), _SUBLANE_BF16)
        else:
            block_b = 256
    Bp = _round_up(B, block_b)

    xp = jnp.zeros((Bp, in_pad), jnp.bfloat16)
    xp = xp.at[:B, :in_dim].set(x.astype(jnp.bfloat16))

    out = _generator0_pallas(
        xp, params["w1"], params["b1"], params["w2"], params["b2"],
        params["w3"], params["b3"], block_b=block_b, block_n=block_n)
    return out[:B, :out_dim]


def init_generator0_params(key, in_dim, mid_dim, out_dim):
    """PyTorch nn.Linear default init: U(-1/sqrt(fan_in), 1/sqrt(fan_in)).
    Weights returned already transposed to (fan_in, fan_out), f32."""
    ks = jax.random.split(key, 6)

    def linear(kw, kb, fan_in, fan_out):
        bound = 1.0 / jnp.sqrt(jnp.float32(fan_in))
        w = jax.random.uniform(kw, (fan_in, fan_out), jnp.float32, -bound, bound)
        b = jax.random.uniform(kb, (1, fan_out), jnp.float32, -bound, bound)
        return w, b

    w1, b1 = linear(ks[0], ks[1], in_dim, mid_dim)
    w2, b2 = linear(ks[2], ks[3], mid_dim, mid_dim)
    w3, b3 = linear(ks[4], ks[5], mid_dim, out_dim)
    return w1, b1, w2, b2, w3, b3


if __name__ == "__main__":
    # Small shapes consistent with the module (Generator0 defaults are
    # in_dim=99, mid_dim=1024, out_dim=99**2; scaled down here).  in_dim=99
    # and out_dim=397 exercise the lane-padding paths; block_n_max=128 forces
    # the N-tiled layer-3 path (grid_j > 1) even at these small sizes.
    B, in_dim, mid_dim, out_dim = 256, 99, 256, 397

    key = jax.random.PRNGKey(0)
    k_x, k_p = jax.random.split(key)

    x = jax.random.normal(k_x, (B, in_dim), jnp.float32)
    raw_params = init_generator0_params(k_p, in_dim, mid_dim, out_dim)
    params = prepare_generator0_params(*raw_params, block_n_max=128)

    out = generator0_forward(x, params)
    out = jax.block_until_ready(out)

    # Plain-JAX f32 reference of the same math (module semantics).
    w1, b1, w2, b2, w3, b3 = raw_params
    h = x @ w1 + b1
    h = jnp.where(h > 0, h, _NEG_SLOPE * h)
    h = h @ w2 + b2
    h = jnp.where(h > 0, h, _NEG_SLOPE * h)
    ref = jnp.tanh(h @ w3 + b3)

    assert out.shape == (B, out_dim)
    # bf16 MXU operands with f32 accumulation -> loosened tolerance.
    err = float(jnp.max(jnp.abs(out - ref)))
    assert jnp.allclose(out, ref, atol=3e-2, rtol=0.0), err

    print("KERNEL_OK")
</pallas_src>

<mosaic_0001>
module attributes {stable_mosaic.version = 11 : i64} {
  func.func @_mlp_kernel(%arg0: i32, %arg1: i32, %arg2: memref<128x128xbf16, #tpu.memory_space<vmem>>, %arg3: memref<128x256xbf16, #tpu.memory_space<vmem>>, %arg4: memref<1x256xf32, #tpu.memory_space<vmem>>, %arg5: memref<256x256xbf16, #tpu.memory_space<vmem>>, %arg6: memref<1x256xf32, #tpu.memory_space<vmem>>, %arg7: memref<256x128xbf16, #tpu.memory_space<vmem>>, %arg8: memref<1x128xf32, #tpu.memory_space<vmem>>, %arg9: memref<128x128xf32, #tpu.memory_space<vmem>>, %arg10: memref<128x256xbf16, #tpu.memory_space<vmem>>) attributes {dimension_semantics = [#tpu.dimension_semantics<parallel>, #tpu.dimension_semantics<arbitrary>], iteration_bounds = array<i64: 2, 4>, scalar_prefetch = 0 : i64, scratch_operands = 1 : i64, tpu.core_type = #tpu.core_type<tc>, window_params = [{transform_indices = @transform_0, window_bounds = array<i64: 128, 128>}, {pipeline_mode = #tpu.pipeline_mode<synchronous>, transform_indices = @transform_1, window_bounds = array<i64: 128, 256>}, {pipeline_mode = #tpu.pipeline_mode<synchronous>, transform_indices = @transform_2, window_bounds = array<i64: 1, 256>}, {pipeline_mode = #tpu.pipeline_mode<synchronous>, transform_indices = @transform_3, window_bounds = array<i64: 256, 256>}, {pipeline_mode = #tpu.pipeline_mode<synchronous>, transform_indices = @transform_4, window_bounds = array<i64: 1, 256>}, {transform_indices = @transform_5, window_bounds = array<i64: 256, 128>}, {transform_indices = @transform_6, window_bounds = array<i64: 1, 128>}, {transform_indices = @transform_7, window_bounds = array<i64: 128, 128>}]} {
    %c0_i32 = arith.constant 0 : i32
    %0 = arith.cmpi eq, %arg1, %c0_i32 : i32
    %1 = arith.extui %0 : i1 to i32
    %cst = arith.constant 0.00999999977 : f32
    %c0_i32_0 = arith.constant 0 : i32
    %2 = arith.cmpi ne, %1, %c0_i32_0 : i32
    scf.if %2 {
      %c0_9 = arith.constant 0 : index
      %c0_10 = arith.constant 0 : index
      %11 = vector.load %arg2[%c0_9, %c0_10] : memref<128x128xbf16, #tpu.memory_space<vmem>>, vector<128x128xbf16>
      %c0_11 = arith.constant 0 : index
      %c0_12 = arith.constant 0 : index
      %12 = vector.load %arg3[%c0_11, %c0_12] : memref<128x256xbf16, #tpu.memory_space<vmem>>, vector<128x256xbf16>
      %cst_13 = arith.constant dense<0.000000e+00> : vector<128x256xf32>
      %13 = tpu.matmul %11, %12, %cst_13 {dimension_numbers = #tpu.dot_dimension_numbers<[1], [0], [0], [1], [0, 0, 1, 1], [], []>} : vector<128x128xbf16>, vector<128x256xbf16>, vector<128x256xf32> -> vector<128x256xf32>
      %c0_14 = arith.constant 0 : index
      %c0_15 = arith.constant 0 : index
      %14 = vector.load %arg4[%c0_14, %c0_15] : memref<1x256xf32, #tpu.memory_space<vmem>>, vector<1x256xf32>
      %15 = vector.broadcast %14 : vector<1x256xf32> to vector<128x256xf32>
      %16 = arith.addf %13, %15 : vector<128x256xf32>
      %17 = vector.broadcast %cst : f32 to vector<128x256xf32>
      %18 = arith.mulf %17, %16 : vector<128x256xf32>
      %19 = arith.maximumf %16, %18 : vector<128x256xf32>
      %20 = arith.truncf %19 : vector<128x256xf32> to vector<128x256xbf16>
      %c0_16 = arith.constant 0 : index
      %c0_17 = arith.constant 0 : index
      %21 = vector.load %arg5[%c0_16, %c0_17] : memref<256x256xbf16, #tpu.memory_space<vmem>>, vector<256x256xbf16>
      %cst_18 = arith.constant dense<0.000000e+00> : vector<128x256xf32>
      %22 = tpu.matmul %20, %21, %cst_18 {dimension_numbers = #tpu.dot_dimension_numbers<[1], [0], [0], [1], [0, 0, 1, 1], [], []>} : vector<128x256xbf16>, vector<256x256xbf16>, vector<128x256xf32> -> vector<128x256xf32>
      %c0_19 = arith.constant 0 : index
      %c0_20 = arith.constant 0 : index
      %23 = vector.load %arg6[%c0_19, %c0_20] : memref<1x256xf32, #tpu.memory_space<vmem>>, vector<1x256xf32>
      %24 = vector.broadcast %23 : vector<1x256xf32> to vector<128x256xf32>
      %25 = arith.addf %22, %24 : vector<128x256xf32>
      %26 = vector.broadcast %cst : f32 to vector<128x256xf32>
      %27 = arith.mulf %26, %25 : vector<128x256xf32>
      %28 = arith.maximumf %25, %27 : vector<128x256xf32>
      %29 = arith.truncf %28 : vector<128x256xf32> to vector<128x256xbf16>
      %c0_21 = arith.constant 0 : index
      %c0_22 = arith.constant 0 : index
      %30 = vector.load %arg10[%c0_21, %c0_22] : memref<128x256xbf16, #tpu.memory_space<vmem>>, vector<128x256xbf16>
      tpu.vector_store %arg10[%c0_21, %c0_22], %29 {strides = array<i32>} : memref<128x256xbf16, #tpu.memory_space<vmem>>, vector<128x256xbf16>,
    } else {
    }
    %c0 = arith.constant 0 : index
    %c0_1 = arith.constant 0 : index
    %3 = vector.load %arg10[%c0, %c0_1] : memref<128x256xbf16, #tpu.memory_space<vmem>>, vector<128x256xbf16>
    %c0_2 = arith.constant 0 : index
    %c0_3 = arith.constant 0 : index
    %4 = vector.load %arg7[%c0_2, %c0_3] : memref<256x128xbf16, #tpu.memory_space<vmem>>, vector<256x128xbf16>
    %cst_4 = arith.constant dense<0.000000e+00> : vector<128x128xf32>
    %5 = tpu.matmul %3, %4, %cst_4 {dimension_numbers = #tpu.dot_dimension_numbers<[1], [0], [0], [1], [0, 0, 1, 1], [], []>} : vector<128x256xbf16>, vector<256x128xbf16>, vector<128x128xf32> -> vector<128x128xf32>
    %c0_5 = arith.constant 0 : index
    %c0_6 = arith.constant 0 : index
    %6 = vector.load %arg8[%c0_5, %c0_6] : memref<1x128xf32, #tpu.memory_space<vmem>>, vector<1x128xf32>
    %7 = vector.broadcast %6 : vector<1x128xf32> to vector<128x128xf32>
    %8 = arith.addf %5, %7 : vector<128x128xf32>
    %9 = math.tanh %8 : vector<128x128xf32>
    %c0_7 = arith.constant 0 : index
    %c0_8 = arith.constant 0 : index
    %10 = vector.load %arg9[%c0_7, %c0_8] : memref<128x128xf32, #tpu.memory_space<vmem>>, vector<128x128xf32>
    tpu.vector_store %arg9[%c0_7, %c0_8], %9 {strides = array<i32>} : memref<128x128xf32, #tpu.memory_space<vmem>>, vector<128x128xf32>,
    return
  }
  func.func @transform_0(%arg0: i32, %arg1: i32) -> (i32, i32) {
    %c0_i32 = arith.constant 0 : i32
    %c0_i32_0 = arith.constant 0 : i32
    return %arg0, %c0_i32 : i32, i32
  }
  func.func @transform_1(%arg0: i32, %arg1: i32) -> (i32, i32) {
    %c0_i32 = arith.constant 0 : i32
    %c0_i32_0 = arith.constant 0 : i32
    %c0_i32_1 = arith.constant 0 : i32
    return %c0_i32, %c0_i32_0 : i32, i32
  }
  func.func @transform_2(%arg0: i32, %arg1: i32) -> (i32, i32) {
    %c0_i32 = arith.constant 0 : i32
    %c0_i32_0 = arith.constant 0 : i32
    %c0_i32_1 = arith.constant 0 : i32
    return %c0_i32, %c0_i32_0 : i32, i32
  }
  func.func @transform_3(%arg0: i32, %arg1: i32) -> (i32, i32) {
    %c0_i32 = arith.constant 0 : i32
    %c0_i32_0 = arith.constant 0 : i32
    %c0_i32_1 = arith.constant 0 : i32
    return %c0_i32, %c0_i32_0 : i32, i32
  }
  func.func @transform_4(%arg0: i32, %arg1: i32) -> (i32, i32) {
    %c0_i32 = arith.constant 0 : i32
    %c0_i32_0 = arith.constant 0 : i32
    %c0_i32_1 = arith.constant 0 : i32
    return %c0_i32, %c0_i32_0 : i32, i32
  }
  func.func @transform_5(%arg0: i32, %arg1: i32) -> (i32, i32) {
    %c0_i32 = arith.constant 0 : i32
    %c0_i32_0 = arith.constant 0 : i32
    return %c0_i32, %arg1 : i32, i32
  }
  func.func @transform_6(%arg0: i32, %arg1: i32) -> (i32, i32) {
    %c0_i32 = arith.constant 0 : i32
    %c0_i32_0 = arith.constant 0 : i32
    return %c0_i32, %arg1 : i32, i32
  }
  func.func @transform_7(%arg0: i32, %arg1: i32) -> (i32, i32) {
    %c0_i32 = arith.constant 0 : i32
    return %arg0, %arg1 : i32, i32
  }
}

</mosaic_0001>

<llo_original>
// kernel: _generator0_pallas.1
$region0: #{_generator0_pallas.1}
  #allocation0 [shape = 'u32[]', space=smem, size = 0x4, offset = 0x4, fixed_abs, tag = 'smem constant byte address 0x4 - core index']
  #allocation1 [shape = 'u32[72,128]{1,0:T(1,128)}', space=vmem, size = 0x9000, scoped, tag = 'internal scratch']
  #allocation2 [shape = 'bf16[128,256]{1,0:T(8,128)(2,1)}', space=vmem, size = 0x10000, scoped, tag = 'scratch operand']
  %s0 = inlined_call_operand.hbm [shape: bf16[256,128], index: 0, kind: input, shape index: {}]
  %s1 = inlined_call_operand.hbm [shape: bf16[128,256], index: 1, kind: input, shape index: {}]
  %s2 = inlined_call_operand.hbm [shape: f32[1,256], index: 2, kind: input, shape index: {}]
  %s3 = inlined_call_operand.hbm [shape: bf16[256,256], index: 3, kind: input, shape index: {}]
  %s4 = inlined_call_operand.hbm [shape: f32[1,256], index: 4, kind: input, shape index: {}]
  %s5 = inlined_call_operand.hbm [shape: bf16[256,512], index: 5, kind: input, shape index: {}]
  %s6 = inlined_call_operand.vmem [shape: f32[1,512], index: 6, kind: input, shape index: {}]
  %s7 = inlined_call_operand.hbm [shape: f32[256,512], index: 7, kind: output, shape index: {}]
  %s8 = sld [smem:[#allocation0]]
  $region89: #{_generator0_pallas.1} parent=0
    _
  %s10 = ssub.s32 1, %s8
  %s11 = scalar_select 0, %s10, %s8
  $region1: #{_generator0_pallas.1} parent=0
    #allocation3 [shape = 'u8[65536]{0}', space=vmem, size = 0x10000, scoped, tag = 'input window, operand 0']
    #allocation4 [shape = 's32[2]{0}', space=sflag, size = 0x8, scoped, tag = 'scoped memory for _generator0_pallas.1']
    #allocation5 [shape = 's32[2]{0}', space=sflag, size = 0x8, scoped, tag = 'scoped memory for _generator0_pallas.1']
    #allocation6 [shape = 'u8[65536]{0}', space=vmem, size = 0x10000, scoped, tag = 'input window, operand 1, single buffered']
    #allocation7 [shape = 's32[1]{0}', space=sflag, size = 0x4, scoped, tag = 'scoped memory for _generator0_pallas.1']
    #allocation8 [shape = 'u8[1024]{0}', space=vmem, size = 0x400, scoped, tag = 'input window, operand 2, single buffered']
    #allocation9 [shape = 'u8[131072]{0}', space=vmem, size = 0x20000, scoped, tag = 'input window, operand 3, single buffered']
    #allocation10 [shape = 's32[1]{0}', space=sflag, size = 0x4, scoped, tag = 'scoped memory for _generator0_pallas.1']
    #allocation11 [shape = 'u8[1024]{0}', space=vmem, size = 0x400, scoped, tag = 'input window, operand 4, single buffered']
    #allocation12 [shape = 'u8[131072]{0}', space=vmem, size = 0x20000, scoped, tag = 'input window, operand 5']
    #allocation13 [shape = 's32[2]{0}', space=sflag, size = 0x8, scoped, tag = 'scoped memory for _generator0_pallas.1']
    #allocation14 [shape = 'u8[131072]{0}', space=vmem, size = 0x20000, scoped, tag = 'output window, operand 0']
    %12 = vsyncpa [#allocation4], 0
    %s13 = scalar_lea.sflag [#allocation4], 1
    %14 = vsyncpa %s13, 0
    %15 = vsyncpa [#allocation7], 0
    %16 = vsyncpa [#allocation10], 0
    %17 = vsyncpa [#allocation13], 0
    %s18 = scalar_lea.sflag [#allocation13], 1
    %19 = vsyncpa %s18, 0
    %20 = vsyncpa [#allocation5], 0
    %s21 = scalar_lea.sflag [#allocation5], 1
    %22 = vsyncpa %s21, 0
    loop: start=0, step=1, limit=10
    $region2: #{_generator0_pallas.1} parent=1 // loop_pre_header
      _
    $region3: #{_generator0_pallas.1} parent=1 // loop_header
      %s24 = sphi 0, %s28
      %p25 = scmp.ge.s32.totalorder %s24, 10
      %s31 = sphi 0, %s43
      %s32 = sphi 0, %s39
      %s33 = sphi 0, %s31
      %s34 = sphi 0, %s32
      %s35 = sphi 0, %s33
      %s36 = sphi 0, %s34
      %s46 = sphi 0, %s48
      %s49 = sphi 0, %s46
      %s50 = sphi 0, %s49
      %s66 = sphi 0, %s50
      %s70 = sphi 0, %s70
      %s72 = sphi 0, %s70
      %s73 = sphi 0, %s72
      %s87 = sphi 0, %s73
      %s91 = sphi 0, %s91
      %s93 = sphi 0, %s91
      %s94 = sphi 0, %s93
      %s108 = sphi 0, %s94
      %s112 = sphi 0, %s112
      %s114 = sphi 0, %s112
      %s115 = sphi 0, %s114
      %s129 = sphi 0, %s115
      %s133 = sphi 0, %s133
      %s135 = sphi 0, %s133
      %s136 = sphi 0, %s135
      %s150 = sphi 0, %s136
      %s156 = sphi 0, %s158
      %s159 = sphi 0, %s156
      %s160 = sphi 0, %s159
      %s176 = sphi 0, %s160
      %s182 = sphi 0, %s184
      %s185 = sphi 0, %s182
      %s186 = sphi 0, %s185
      %s202 = sphi 0, %s186
      %s210 = sphi 0, %s212
      %s213 = sphi 0, %s210
      %s214 = sphi 0, %s213
      %s230 = sphi 0, %s214
    $region4: #{_generator0_pallas.1} parent=1 // loop_header_branch
      %27 = sbr.rel (%p25) target = $region8
    $region5: #{_generator0_pallas.1} parent=1 // loop_body
      %s29 = ssub.s32 %s24, 1
      %s30 = ssub.s32 %s24, 2
      %s37 = sadd.s32 1, %s32
      %p38 = scmp.ge.s32.totalorder %s37, 4
      %s39 = scalar_select %p38, 0, %s37
      %s40 = sadd.s32 1, %s31
      %s41 = scalar_select %p38, %s40, %s31
      %p42 = scmp.ge.s32.totalorder %s41, 2
      %s43 = scalar_select %p42, 0, %s41
      %s44 = ssub.s32 %s31, %s43
      %p45 = scmp.eq.s32.totalorder %s44, 0
      %s47 = sadd.s32 %s46, 1
      %s48 = scalar_select %p45, %s46, %s47
      %p51 = pneg %p45
      %p52 = scmp.eq.s32.totalorder %s24, 7
      %p53 = por %p51, %p52
      %p54 = scmp.ne.s32.totalorder %s46, %s49
      %p55 = scmp.eq.s32.totalorder %s24, 0
      %p56 = por %p54, %p55
      %p57 = scmp.ne.s32.totalorder %s46, %s49
      %p58 = scmp.eq.s32.totalorder %s29, 7
      %p59 = por %p57, %p58
      %p60 = scmp.ne.s32.totalorder %s49, %s50
      %p61 = scmp.eq.s32.totalorder %s29, 0
      %p62 = por %p60, %p61
      %p63 = scmp.ne.s32.totalorder %s49, %s50
      %p64 = scmp.eq.s32.totalorder %s30, 7
      %p65 = por %p63, %p64
      %p67 = scmp.ne.s32.totalorder %s50, %s66
      %p68 = scmp.eq.s32.totalorder %s30, 0
      %p69 = por %p67, %p68
      %s71 = sadd.s32 %s70, 1
      %p74 = scmp.eq.s32.totalorder %s24, 7
      %p75 = scmp.ne.s32.totalorder %s70, %s72
      %p76 = scmp.eq.s32.totalorder %s24, 0
      %p77 = por %p75, %p76
      %p78 = scmp.ne.s32.totalorder %s70, %s72
      %p79 = scmp.eq.s32.totalorder %s29, 7
      %p80 = por %p78, %p79
      %p81 = scmp.ne.s32.totalorder %s72, %s73
      %p82 = scmp.eq.s32.totalorder %s29, 0
      %p83 = por %p81, %p82
      %p84 = scmp.ne.s32.totalorder %s72, %s73
      %p85 = scmp.eq.s32.totalorder %s30, 7
      %p86 = por %p84, %p85
      %p88 = scmp.ne.s32.totalorder %s73, %s87
      %p89 = scmp.eq.s32.totalorder %s30, 0
      %p90 = por %p88, %p89
      %s92 = sadd.s32 %s91, 1
      %p95 = scmp.eq.s32.totalorder %s24, 7
      %p96 = scmp.ne.s32.totalorder %s91, %s93
      %p97 = scmp.eq.s32.totalorder %s24, 0
      %p98 = por %p96, %p97
      %p99 = scmp.ne.s32.totalorder %s91, %s93
      %p100 = scmp.eq.s32.totalorder %s29, 7
      %p101 = por %p99, %p100
      %p102 = scmp.ne.s32.totalorder %s93, %s94
      %p103 = scmp.eq.s32.totalorder %s29, 0
      %p104 = por %p102, %p103
      %p105 = scmp.ne.s32.totalorder %s93, %s94
      %p106 = scmp.eq.s32.totalorder %s30, 7
      %p107 = por %p105, %p106
      %p109 = scmp.ne.s32.totalorder %s94, %s108
      %p110 = scmp.eq.s32.totalorder %s30, 0
      %p111 = por %p109, %p110
      %s113 = sadd.s32 %s112, 1
      %p116 = scmp.eq.s32.totalorder %s24, 7
      %p117 = scmp.ne.s32.totalorder %s112, %s114
      %p118 = scmp.eq.s32.totalorder %s24, 0
      %p119 = por %p117, %p118
      %p120 = scmp.ne.s32.totalorder %s112, %s114
      %p121 = scmp.eq.s32.totalorder %s29, 7
      %p122 = por %p120, %p121
      %p123 = scmp.ne.s32.totalorder %s114, %s115
      %p124 = scmp.eq.s32.totalorder %s29, 0
      %p125 = por %p123, %p124
      %p126 = scmp.ne.s32.totalorder %s114, %s115
      %p127 = scmp.eq.s32.totalorder %s30, 7
      %p128 = por %p126, %p127
      %p130 = scmp.ne.s32.totalorder %s115, %s129
      %p131 = scmp.eq.s32.totalorder %s30, 0
      %p132 = por %p130, %p131
      %s134 = sadd.s32 %s133, 1
      %p137 = scmp.eq.s32.totalorder %s24, 7
      %p138 = scmp.ne.s32.totalorder %s133, %s135
      %p139 = scmp.eq.s32.totalorder %s24, 0
      %p140 = por %p138, %p139
      %p141 = scmp.ne.s32.totalorder %s133, %s135
      %p142 = scmp.eq.s32.totalorder %s29, 7
      %p143 = por %p141, %p142
      %p144 = scmp.ne.s32.totalorder %s135, %s136
      %p145 = scmp.eq.s32.totalorder %s29, 0
      %p146 = por %p144, %p145
      %p147 = scmp.ne.s32.totalorder %s135, %s136
      %p148 = scmp.eq.s32.totalorder %s30, 7
      %p149 = por %p147, %p148
      %p151 = scmp.ne.s32.totalorder %s136, %s150
      %p152 = scmp.eq.s32.totalorder %s30, 0
      %p153 = por %p151, %p152
      %s154 = ssub.s32 %s32, %s39
      %p155 = scmp.eq.s32.totalorder %s154, 0
      %s157 = sadd.s32 %s156, 1
      %s158 = scalar_select %p155, %s156, %s157
      %p161 = pneg %p155
      %p162 = scmp.eq.s32.totalorder %s24, 7
      %p163 = por %p161, %p162
      %p164 = scmp.ne.s32.totalorder %s156, %s159
      %p165 = scmp.eq.s32.totalorder %s24, 0
      %p166 = por %p164, %p165
      %p167 = scmp.ne.s32.totalorder %s156, %s159
      %p168 = scmp.eq.s32.totalorder %s29, 7
      %p169 = por %p167, %p168
      %p170 = scmp.ne.s32.totalorder %s159, %s160
      %p171 = scmp.eq.s32.totalorder %s29, 0
      %p172 = por %p170, %p171
      %p173 = scmp.ne.s32.totalorder %s159, %s160
      %p174 = scmp.eq.s32.totalorder %s30, 7
      %p175 = por %p173, %p174
      %p177 = scmp.ne.s32.totalorder %s160, %s176
      %p178 = scmp.eq.s32.totalorder %s30, 0
      %p179 = por %p177, %p178
      %s180 = ssub.s32 %s32, %s39
      %p181 = scmp.eq.s32.totalorder %s180, 0
      %s183 = sadd.s32 %s182, 1
      %s184 = scalar_select %p181, %s182, %s183
      %p187 = pneg %p181
      %p188 = scmp.eq.s32.totalorder %s24, 7
      %p189 = por %p187, %p188
      %p190 = scmp.ne.s32.totalorder %s182, %s185
      %p191 = scmp.eq.s32.totalorder %s24, 0
      %p192 = por %p190, %p191
      %p193 = scmp.ne.s32.totalorder %s182, %s185
      %p194 = scmp.eq.s32.totalorder %s29, 7
      %p195 = por %p193, %p194
      %p196 = scmp.ne.s32.totalorder %s185, %s186
      %p197 = scmp.eq.s32.totalorder %s29, 0
      %p198 = por %p196, %p197
      %p199 = scmp.ne.s32.totalorder %s185, %s186
      %p200 = scmp.eq.s32.totalorder %s30, 7
      %p201 = por %p199, %p200
      %p203 = scmp.ne.s32.totalorder %s186, %s202
      %p204 = scmp.eq.s32.totalorder %s30, 0
      %p205 = por %p203, %p204
      %s206 = ssub.s32 %s31, %s43
      %s207 = ssub.s32 %s32, %s39
      %s208 = sor.u32 %s206, %s207
      %p209 = scmp.eq.s32.totalorder %s208, 0
      %s211 = sadd.s32 %s210, 1
      %s212 = scalar_select %p209, %s210, %s211
      %p215 = pneg %p209
      %p216 = scmp.eq.s32.totalorder %s24, 7
      %p217 = por %p215, %p216
      %p218 = scmp.ne.s32.totalorder %s210, %s213
      %p219 = scmp.eq.s32.totalorder %s24, 0
      %p220 = por %p218, %p219
      %p221 = scmp.ne.s32.totalorder %s210, %s213
      %p222 = scmp.eq.s32.totalorder %s29, 7
      %p223 = por %p221, %p222
      %p224 = scmp.ne.s32.totalorder %s213, %s214
      %p225 = scmp.eq.s32.totalorder %s29, 0
      %p226 = por %p224, %p225
      %p227 = scmp.ne.s32.totalorder %s213, %s214
      %p228 = scmp.eq.s32.totalorder %s30, 7
      %p229 = por %p227, %p228
      %p231 = scmp.ne.s32.totalorder %s214, %s230
      %p232 = scmp.eq.s32.totalorder %s30, 0
      %p233 = por %p231, %p232
      %p234 = scmp.le.s32.totalorder 1, %s24
      %p235 = scmp.lt.s32.totalorder %s24, 9
      %p236 = pnand %p234, %p235
      %p237 = pneg %p236
      // Predicated region
      $region9: #{_generator0_pallas.1} parent=5 // pred_check
        _
      $region10: #{_generator0_pallas.1} parent=5 // pred_check_branch
        %239 = sbr.rel (%p236) target = $region12
      $region11: #{_generator0_pallas.1} parent=5 // pred_region
        %s240 = ssub.s32 %s24, 1
        // Predicated region
        $region13: #{_generator0_pallas.1} parent=11 // pred_check
          %p241 = pneg %p83
        $region14: #{_generator0_pallas.1} parent=11 // pred_check_branch
          %243 = sbr.rel (%p241) target = $region16
        $region15: #{_generator0_pallas.1} parent=11 // pred_region
          %245 = vsyncadd [#allocation7], 0
          %s246 = sshll.u32 %s1, 4
          %s247 = int_to_ptr.hbm [resolvable:$true] %s246
          %s248 = sshll.u32 [#allocation6], 4
          %s249 = int_to_ptr.vmem [resolvable:$true] %s248
          %254 = dma.hbm_to_vmem [thread:$0]  %s247, 2048, %s249, [#allocation7], 128, 128, 8
        $region16: #{_generator0_pallas.1} parent=11 // pred_fallthru
          _
        // Predicated region
        $region17: #{_generator0_pallas.1} parent=11 // pred_check
          %p255 = pneg %p104
        $region18: #{_generator0_pallas.1} parent=11 // pred_check_branch
          %257 = sbr.rel (%p255) target = $region20
        $region19: #{_generator0_pallas.1} parent=11 // pred_region
          %259 = vsyncadd [#allocation7], 0
          %s261 = sshll.u32 %s2, 4
          %s262 = int_to_ptr.hbm [resolvable:$true] %s261
          %s263 = sshll.u32 [#allocation8], 4
          %s264 = int_to_ptr.vmem [resolvable:$true] %s263
          %266 = dma.hbm_to_vmem [thread:$0]  %s262, 32, %s264, [#allocation7]
        $region20: #{_generator0_pallas.1} parent=11 // pred_fallthru
          _
        // Predicated region
        $region21: #{_generator0_pallas.1} parent=11 // pred_check
          %p267 = pneg %p125
        $region22: #{_generator0_pallas.1} parent=11 // pred_check_branch
          %269 = sbr.rel (%p267) target = $region24
        $region23: #{_generator0_pallas.1} parent=11 // pred_region
          %271 = vsyncadd [#allocation10], 0
          %s272 = sshll.u32 %s3, 4
          %s273 = int_to_ptr.hbm [resolvable:$true] %s272
          %s274 = sshll.u32 [#allocation9], 4
          %s275 = int_to_ptr.vmem [resolvable:$true] %s274
          %280 = dma.hbm_to_vmem [thread:$0]  %s273, 4096, %s275, [#allocation10], 128, 128, 8
        $region24: #{_generator0_pallas.1} parent=11 // pred_fallthru
          _
        // Predicated region
        $region25: #{_generator0_pallas.1} parent=11 // pred_check
          %p281 = pneg %p146
        $region26: #{_generator0_pallas.1} parent=11 // pred_check_branch
          %283 = sbr.rel (%p281) target = $region28
        $region27: #{_generator0_pallas.1} parent=11 // pred_region
          %285 = vsyncadd [#allocation10], 0
          %s287 = sshll.u32 %s4, 4
          %s288 = int_to_ptr.hbm [resolvable:$true] %s287
          %s289 = sshll.u32 [#allocation11], 4
          %s290 = int_to_ptr.vmem [resolvable:$true] %s289
          %292 = dma.hbm_to_vmem [thread:$0]  %s288, 32, %s290, [#allocation10]
        $region28: #{_generator0_pallas.1} parent=11 // pred_fallthru
          _
      $region12: #{_generator0_pallas.1} parent=5 // pred_fallthru
        _
      %p293 = scmp.lt.s32.totalorder %s24, 8
      // Predicated region
      $region29: #{_generator0_pallas.1} parent=5 // pred_check
        %p294 = pneg %p293
      $region30: #{_generator0_pallas.1} parent=5 // pred_check_branch
        %296 = sbr.rel (%p294) target = $region32
      $region31: #{_generator0_pallas.1} parent=5 // pred_region
        // Predicated region
        $region33: #{_generator0_pallas.1} parent=31 // pred_check
          %p297 = pneg %p56
        $region34: #{_generator0_pallas.1} parent=31 // pred_check_branch
          %299 = sbr.rel (%p297) target = $region36
        $region35: #{_generator0_pallas.1} parent=31 // pred_region
          %s300 = sand.u32 %s46, 1
          %s301 = scalar_lea.sflag [#allocation4], %s300
          %s302 = sand.u32 %s46, 1
          %s303 = smul.addr %s302, 64
          %s304 = scalar_lea.vmem [#allocation3], %s303
          %s305 = smul.u32 16, %s31
          %307 = vsyncadd %s301, 0
          %s308 = smul.addr %s305, 4
          %s309 = scalar_lea.hbm %s0, %s308
          %s310 = sshll.u32 %s309, 4
          %s311 = int_to_ptr.hbm [resolvable:$true] %s310
          %s312 = sshll.u32 %s304, 4
          %s313 = int_to_ptr.vmem [resolvable:$true] %s312
          %318 = dma.hbm_to_vmem [thread:$0]  %s311, 1024, %s313, %s301, 64, 64, 4
        $region36: #{_generator0_pallas.1} parent=31 // pred_fallthru
          _
        // Predicated region
        $region37: #{_generator0_pallas.1} parent=31 // pred_check
          %p319 = pneg %p166
        $region38: #{_generator0_pallas.1} parent=31 // pred_check_branch
          %321 = sbr.rel (%p319) target = $region40
        $region39: #{_generator0_pallas.1} parent=31 // pred_region
          %s322 = sand.u32 %s156, 1
          %s323 = scalar_lea.sflag [#allocation13], %s322
          %s324 = sand.u32 %s156, 1
          %s325 = smul.addr %s324, 128
          %s326 = scalar_lea.vmem [#allocation12], %s325
          %328 = vsyncadd %s323, 0
          %s329 = smul.addr %s32, 4
          %s330 = scalar_lea.hbm %s5, %s329
          %s331 = sshll.u32 %s330, 4
          %s332 = int_to_ptr.hbm [resolvable:$true] %s331
          %s333 = sshll.u32 %s326, 4
          %s334 = int_to_ptr.vmem [resolvable:$true] %s333
          %339 = dma.hbm_to_vmem [thread:$0]  %s332, 2048, %s334, %s323, 256, 64, 4
        $region40: #{_generator0_pallas.1} parent=31 // pred_fallthru
          _
        // Predicated region
        $region41: #{_generator0_pallas.1} parent=31 // pred_check
          %p340 = pneg %p192
        $region42: #{_generator0_pallas.1} parent=31 // pred_check_branch
          %342 = sbr.rel (%p340) target = $region44
        $region43: #{_generator0_pallas.1} parent=31 // pred_region
          %p343 = scmp.lt.s32.totalorder %s32, 3
          %s344 = scalar_select %p343, %s32, 3
          %s345 = scalar_lea.vmem %s6, %s344
        $region44: #{_generator0_pallas.1} parent=31 // pred_fallthru
          _
      $region32: #{_generator0_pallas.1} parent=5 // pred_fallthru
        _
      %p346 = scmp.le.s32.totalorder 1, %s24
      %p347 = scmp.lt.s32.totalorder %s24, 9
      %p348 = pnand %p346, %p347
      %p349 = pneg %p348
      // Predicated region
      $region45: #{_generator0_pallas.1} parent=5 // pred_check
        _
      $region46: #{_generator0_pallas.1} parent=5 // pred_check_branch
        %351 = sbr.rel (%p348) target = $region48
      $region47: #{_generator0_pallas.1} parent=5 // pred_region
        %s352 = ssub.s32 %s24, 1
        %s353 = sand.u32 %s49, 1
        %s354 = scalar_lea.sflag [#allocation4], %s353
        %s355 = sand.u32 %s49, 1
        %s356 = smul.addr %s355, 64
        %s357 = scalar_lea.vmem [#allocation3], %s356
        // Predicated region
        $region49: #{_generator0_pallas.1} parent=47 // pred_check
          %p358 = pneg %p62
        $region50: #{_generator0_pallas.1} parent=47 // pred_check_branch
          %360 = sbr.rel (%p358) target = $region52
        $region51: #{_generator0_pallas.1} parent=47 // pred_region
          %362 = dma.done %s354, 1024
        $region52: #{_generator0_pallas.1} parent=47 // pred_fallthru
          _
        // Predicated region
        $region53: #{_generator0_pallas.1} parent=47 // pred_check
          %p363 = pneg %p83
        $region54: #{_generator0_pallas.1} parent=47 // pred_check_branch
          %365 = sbr.rel (%p363) target = $region56
        $region55: #{_generator0_pallas.1} parent=47 // pred_region
          %367 = dma.done [#allocation7], 2048
        $region56: #{_generator0_pallas.1} parent=47 // pred_fallthru
          _
        // Predicated region
        $region57: #{_generator0_pallas.1} parent=47 // pred_check
          %p368 = pneg %p104
        $region58: #{_generator0_pallas.1} parent=47 // pred_check_branch
          %370 = sbr.rel (%p368) target = $region60
        $region59: #{_generator0_pallas.1} parent=47 // pred_region
          %372 = dma.done [#allocation7], 32
        $region60: #{_generator0_pallas.1} parent=47 // pred_fallthru
          _
        // Predicated region
        $region61: #{_generator0_pallas.1} parent=47 // pred_check
          %p373 = pneg %p125
        $region62: #{_generator0_pallas.1} parent=47 // pred_check_branch
          %375 = sbr.rel (%p373) target = $region64
        $region63: #{_generator0_pallas.1} parent=47 // pred_region
          %377 = dma.done [#allocation10], 4096
        $region64: #{_generator0_pallas.1} parent=47 // pred_fallthru
          _
        // Predicated region
        $region65: #{_generator0_pallas.1} parent=47 // pred_check
          %p378 = pneg %p146
        $region66: #{_generator0_pallas.1} parent=47 // pred_check_branch
          %380 = sbr.rel (%p378) target = $region68
        $region67: #{_generator0_pallas.1} parent=47 // pred_region
          %382 = dma.done [#allocation10], 32
        $region68: #{_generator0_pallas.1} parent=47 // pred_fallthru
          _
        %s383 = sand.u32 %s159, 1
        %s384 = scalar_lea.sflag [#allocation13], %s383
        %s385 = sand.u32 %s159, 1
        %s386 = smul.addr %s385, 128
        %s387 = scalar_lea.vmem [#allocation12], %s386
        // Predicated region
        $region69: #{_generator0_pallas.1} parent=47 // pred_check
          %p388 = pneg %p172
        $region70: #{_generator0_pallas.1} parent=47 // pred_check_branch
          %390 = sbr.rel (%p388) target = $region72
        $region71: #{_generator0_pallas.1} parent=47 // pred_region
          %392 = dma.done %s384, 2048
        $region72: #{_generator0_pallas.1} parent=47 // pred_fallthru
          _
        %s393 = sand.u32 %s49, 1
        %s394 = scalar_lea.sflag [#allocation4], %s393
        %s395 = sand.u32 %s49, 1
        %s396 = smul.addr %s395, 64
        %s397 = scalar_lea.vmem [#allocation3], %s396
        %p398 = pneg %p62
        %p399 = pneg %p59
        %p400 = pneg %p83
        %p401 = pneg %p80
        %p402 = pneg %p104
        %p403 = pneg %p101
        %p404 = pneg %p125
        %p405 = pneg %p122
        %p406 = pneg %p146
        %p407 = pneg %p143
        %s408 = sand.u32 %s159, 1
        %s409 = scalar_lea.sflag [#allocation13], %s408
        %s410 = sand.u32 %s159, 1
        %s411 = smul.addr %s410, 128
        %s412 = scalar_lea.vmem [#allocation12], %s411
        %p413 = pneg %p172
        %p414 = pneg %p169
        %p415 = scmp.lt.s32.totalorder %s34, 3
        %s416 = scalar_select %p415, %s34, 3
        %s417 = scalar_lea.vmem %s6, %s416
        %p418 = pneg %p198
        %p419 = pneg %p195
        %p420 = pneg %p226
        %p421 = pneg %p223
        %s422 = sand.u32 %s213, 1
        %s423 = scalar_lea.sflag [#allocation5], %s422
        %s424 = sand.u32 %s213, 1
        %s425 = smul.addr %s424, 128
        %s426 = scalar_lea.vmem [#allocation14], %s425
        %s427 = smul.u32 16, %s33
        %p428 = scmp.lt.s32.totalorder %s34, 3
        %s429 = scalar_select %p428, %s34, 3
        %s430 = scalar_lea.vmem %s6, %s429
        %s431 = smul.u32 16, %s33
        %p432 = scmp.eq.s32.totalorder %s34, 0
        // Predicated region
        $region73: #{_generator0_pallas.1} parent=47 // pred_check
          %p433 = pneg %p432
        $region74: #{_generator0_pallas.1} parent=47 // pred_check_branch
          %435 = sbr.rel (%p433) target = $region76
        $region75: #{_generator0_pallas.1} parent=47 // pred_region
          %v436 = vld [vmem:[%s357] sm:$0xf]
          %v437 = vld [vmem:[%s357 + $0x4] sm:$0xf]
          %v438 = vld [vmem:[%s357 + $0x8] sm:$0xf]
          %v439 = vld [vmem:[%s357 + $0xc] sm:$0xf]
          %v440 = vld [vmem:[%s357 + $0x10] sm:$0xf]
          %v441 = vld [vmem:[%s357 + $0x14] sm:$0xf]
          %v442 = vld [vmem:[%s357 + $0x18] sm:$0xf]
          %v443 = vld [vmem:[%s357 + $0x1c] sm:$0xf]
          %v444 = vld [vmem:[%s357 + $0x20] sm:$0xf]
          %v445 = vld [vmem:[%s357 + $0x24] sm:$0xf]
          %v446 = vld [vmem:[%s357 + $0x28] sm:$0xf]
          %v447 = vld [vmem:[%s357 + $0x2c] sm:$0xf]
          %v448 = vld [vmem:[%s357 + $0x30] sm:$0xf]
          %v449 = vld [vmem:[%s357 + $0x34] sm:$0xf]
          %v450 = vld [vmem:[%s357 + $0x38] sm:$0xf]
          %v451 = vld [vmem:[%s357 + $0x3c] sm:$0xf]
          %v452 = vld [vmem:[#allocation6] sm:$0xff]
          %v453 = vld [vmem:[#allocation6 + $0x8] sm:$0xff]
          %v454 = vld [vmem:[#allocation6 + $0x10] sm:$0xff]
          %v455 = vld [vmem:[#allocation6 + $0x18] sm:$0xff]
          %v456 = vld [vmem:[#allocation6 + $0x20] sm:$0xff]
          %v457 = vld [vmem:[#allocation6 + $0x28] sm:$0xff]
          %v458 = vld [vmem:[#allocation6 + $0x30] sm:$0xff]
          %v459 = vld [vmem:[#allocation6 + $0x38] sm:$0xff]
          %v460 = vld [vmem:[#allocation6 + $0x40] sm:$0xff]
          %v461 = vld [vmem:[#allocation6 + $0x48] sm:$0xff]
          %v462 = vld [vmem:[#allocation6 + $0x50] sm:$0xff]
          %v463 = vld [vmem:[#allocation6 + $0x58] sm:$0xff]
          %v464 = vld [vmem:[#allocation6 + $0x60] sm:$0xff]
          %v465 = vld [vmem:[#allocation6 + $0x68] sm:$0xff]
          %v466 = vld [vmem:[#allocation6 + $0x70] sm:$0xff]
          %v467 = vld [vmem:[#allocation6 + $0x78] sm:$0xff]
          %v468 = vld [vmem:[#allocation8] sm:$0x3]
          %v470 = vperm.slane %v468, 0
          %v471 = vperm.slane %v468, 1
          %v490 = vunpack.c.l.b16 %v436
          %v491 = vunpack.c.l.b16 %v437
          %v492 = vunpack.c.l.b16 %v438
          %v493 = vunpack.c.l.b16 %v439
          %v494 = vunpack.c.l.b16 %v440
          %v495 = vunpack.c.l.b16 %v441
          %v496 = vunpack.c.l.b16 %v442
          %v497 = vunpack.c.l.b16 %v443
          %v498 = vunpack.c.l.b16 %v444
          %v499 = vunpack.c.l.b16 %v445
          %v500 = vunpack.c.l.b16 %v446
          %v501 = vunpack.c.l.b16 %v447
          %v502 = vunpack.c.l.b16 %v448
          %v503 = vunpack.c.l.b16 %v449
          %v504 = vunpack.c.l.b16 %v450
          %v505 = vunpack.c.l.b16 %v451
          %v506 = vpack.c.b16 %v491, %v490
          %v507 = vpack.c.b16 %v493, %v492
          %v508 = vpack.c.b16 %v495, %v494
          %v509 = vpack.c.b16 %v497, %v496
          %v510 = vpack.c.b16 %v499, %v498
          %v511 = vpack.c.b16 %v501, %v500
          %v512 = vpack.c.b16 %v503, %v502
          %v513 = vpack.c.b16 %v505, %v504
          %v538 = vunpack.c.l.b16 %v452
          %v539 = vunpack.c.h.b16 %v452
          %v540 = vunpack.c.l.b16 %v453
          %v541 = vunpack.c.h.b16 %v453
          %v542 = vunpack.c.l.b16 %v454
          %v543 = vunpack.c.h.b16 %v454
          %v544 = vunpack.c.l.b16 %v455
          %v545 = vunpack.c.h.b16 %v455
          %v546 = vunpack.c.l.b16 %v456
          %v547 = vunpack.c.h.b16 %v456
          %v548 = vunpack.c.l.b16 %v457
          %v549 = vunpack.c.h.b16 %v457
          %v550 = vunpack.c.l.b16 %v458
          %v551 = vunpack.c.h.b16 %v458
          %v552 = vunpack.c.l.b16 %v459
          %v553 = vunpack.c.h.b16 %v459
          %v554 = vunpack.c.l.b16 %v460
          %v555 = vunpack.c.h.b16 %v460
          %v556 = vunpack.c.l.b16 %v461
          %v557 = vunpack.c.h.b16 %v461
          %v558 = vunpack.c.l.b16 %v462
          %v559 = vunpack.c.h.b16 %v462
          %v560 = vunpack.c.l.b16 %v463
          %v561 = vunpack.c.h.b16 %v463
          %v562 = vunpack.c.l.b16 %v464
          %v563 = vunpack.c.h.b16 %v464
          %v564 = vunpack.c.l.b16 %v465
          %v565 = vunpack.c.h.b16 %v465
          %v566 = vunpack.c.l.b16 %v466
          %v567 = vunpack.c.h.b16 %v466
          %v568 = vunpack.c.l.b16 %v467
          %v569 = vunpack.c.h.b16 %v467
          %v570 = vpack.c.b16 %v540, %v538
          %v571 = vpack.c.b16 %v541, %v539
          %v572 = vpack.c.b16 %v544, %v542
          %v573 = vpack.c.b16 %v545, %v543
          %v574 = vpack.c.b16 %v548, %v546
          %v575 = vpack.c.b16 %v549, %v547
          %v576 = vpack.c.b16 %v552, %v550
          %v577 = vpack.c.b16 %v553, %v551
          %v578 = vpack.c.b16 %v556, %v554
          %v579 = vpack.c.b16 %v557, %v555
          %v580 = vpack.c.b16 %v560, %v558
          %v581 = vpack.c.b16 %v561, %v559
          %v582 = vpack.c.b16 %v564, %v562
          %v583 = vpack.c.b16 %v565, %v563
          %v584 = vpack.c.b16 %v568, %v566
          %v585 = vpack.c.b16 %v569, %v567
          %602 = vmatpush.bf16.msra.mxu0 %v584
          %603 = vmatpush.bf16.msra.mxu0 %v582
          %604 = vmatpush.bf16.msra.mxu0 %v580
          %605 = vmatpush.bf16.msra.mxu0 %v578
          %606 = vmatpush.bf16.msra.mxu0 %v576
          %607 = vmatpush.bf16.msra.mxu0 %v574
          %608 = vmatpush.bf16.msra.mxu0 %v572
          %609 = vmatpush.bf16.msra.mxu0 %v570
          %610 = vmatmul.bf16.gmra.mxu0 %v506
          %v611 = vpop.f32.mrf.mxu0
          %v612 = vadd.f32 %v470, %v611
          %v613 = vpop.f32.mrf.mxu0
          %v614 = vadd.f32 %v470, %v613
          %615 = vmatmul.bf16.gmra.mxu0 %v507
          %v616 = vpop.f32.mrf.mxu0
          %v617 = vadd.f32 %v470, %v616
          %v618 = vpop.f32.mrf.mxu0
          %v619 = vadd.f32 %v470, %v618
          %620 = vmatmul.bf16.gmra.mxu0 %v508
          %v621 = vpop.f32.mrf.mxu0
          %v622 = vadd.f32 %v470, %v621
          %v623 = vpop.f32.mrf.mxu0
          %v624 = vadd.f32 %v470, %v623
          %625 = vmatmul.bf16.gmra.mxu0 %v509
          %v626 = vpop.f32.mrf.mxu0
          %v627 = vadd.f32 %v470, %v626
          %v628 = vpop.f32.mrf.mxu0
          %v629 = vadd.f32 %v470, %v628
          %630 = vmatmul.bf16.gmra.mxu0 %v510
          %v631 = vpop.f32.mrf.mxu0
          %v632 = vadd.f32 %v470, %v631
          %v633 = vpop.f32.mrf.mxu0
          %v634 = vadd.f32 %v470, %v633
          %635 = vmatmul.bf16.gmra.mxu0 %v511
          %v636 = vpop.f32.mrf.mxu0
          %v637 = vadd.f32 %v470, %v636
          %v638 = vpop.f32.mrf.mxu0
          %v639 = vadd.f32 %v470, %v638
          %640 = vmatmul.bf16.gmra.mxu0 %v512
          %v641 = vpop.f32.mrf.mxu0
          %v642 = vadd.f32 %v470, %v641
          %v643 = vpop.f32.mrf.mxu0
          %v644 = vadd.f32 %v470, %v643
          %645 = vmatmul.bf16.gmra.mxu0 %v513
          %v646 = vpop.f32.mrf.mxu0
          %v647 = vadd.f32 %v470, %v646
          %v648 = vpop.f32.mrf.mxu0
          %v649 = vadd.f32 %v470, %v648
          %650 = vdwg.mxu0
          %651 = vmatpush.bf16.msra.mxu0 %v585
          %652 = vmatpush.bf16.msra.mxu0 %v583
          %653 = vmatpush.bf16.msra.mxu0 %v581
          %654 = vmatpush.bf16.msra.mxu0 %v579
          %655 = vmatpush.bf16.msra.mxu0 %v577
          %656 = vmatpush.bf16.msra.mxu0 %v575
          %657 = vmatpush.bf16.msra.mxu0 %v573
          %658 = vmatpush.bf16.msra.mxu0 %v571
          %659 = vmatmul.bf16.gmra.mxu0 %v506
          %v660 = vpop.f32.mrf.mxu0
          %v661 = vadd.f32 %v471, %v660
          %v662 = vpop.f32.mrf.mxu0
          %v663 = vadd.f32 %v471, %v662
          %664 = vmatmul.bf16.gmra.mxu0 %v507
          %v665 = vpop.f32.mrf.mxu0
          %v666 = vadd.f32 %v471, %v665
          %v667 = vpop.f32.mrf.mxu0
          %v668 = vadd.f32 %v471, %v667
          %669 = vmatmul.bf16.gmra.mxu0 %v508
          %v670 = vpop.f32.mrf.mxu0
          %v671 = vadd.f32 %v471, %v670
          %v672 = vpop.f32.mrf.mxu0
          %v673 = vadd.f32 %v471, %v672
          %674 = vmatmul.bf16.gmra.mxu0 %v509
          %v675 = vpop.f32.mrf.mxu0
          %v676 = vadd.f32 %v471, %v675
          %v677 = vpop.f32.mrf.mxu0
          %v678 = vadd.f32 %v471, %v677
          %679 = vmatmul.bf16.gmra.mxu0 %v510
          %v680 = vpop.f32.mrf.mxu0
          %v681 = vadd.f32 %v471, %v680
          %v682 = vpop.f32.mrf.mxu0
          %v683 = vadd.f32 %v471, %v682
          %684 = vmatmul.bf16.gmra.mxu0 %v511
          %v685 = vpop.f32.mrf.mxu0
          %v686 = vadd.f32 %v471, %v685
          %v687 = vpop.f32.mrf.mxu0
          %v688 = vadd.f32 %v471, %v687
          %689 = vmatmul.bf16.gmra.mxu0 %v512
          %v690 = vpop.f32.mrf.mxu0
          %v691 = vadd.f32 %v471, %v690
          %v692 = vpop.f32.mrf.mxu0
          %v693 = vadd.f32 %v471, %v692
          %694 = vmatmul.bf16.gmra.mxu0 %v513
          %v695 = vpop.f32.mrf.mxu0
          %v696 = vadd.f32 %v471, %v695
          %v697 = vpop.f32.mrf.mxu0
          %v698 = vadd.f32 %v471, %v697
          %699 = vdwg.mxu0
          %v700 = vmul.f32 %v612, 0.01
          %v701 = vmul.f32 %v661, 0.01
          %v702 = vmul.f32 %v614, 0.01
          %v703 = vmul.f32 %v663, 0.01
          %v704 = vmul.f32 %v617, 0.01
          %v705 = vmul.f32 %v666, 0.01
          %v706 = vmul.f32 %v619, 0.01
          %v707 = vmul.f32 %v668, 0.01
          %v708 = vmul.f32 %v622, 0.01
          %v709 = vmul.f32 %v671, 0.01
          %v710 = vmul.f32 %v624, 0.01
          %v711 = vmul.f32 %v673, 0.01
          %v712 = vmul.f32 %v627, 0.01
          %v713 = vmul.f32 %v676, 0.01
          %v714 = vmul.f32 %v629, 0.01
          %v715 = vmul.f32 %v678, 0.01
          %v716 = vmul.f32 %v632, 0.01
          %v717 = vmul.f32 %v681, 0.01
          %v718 = vmul.f32 %v634, 0.01
          %v719 = vmul.f32 %v683, 0.01
          %v720 = vmul.f32 %v637, 0.01
          %v721 = vmul.f32 %v686, 0.01
          %v722 = vmul.f32 %v639, 0.01
          %v723 = vmul.f32 %v688, 0.01
          %v724 = vmul.f32 %v642, 0.01
          %v725 = vmul.f32 %v691, 0.01
          %v726 = vmul.f32 %v644, 0.01
          %v727 = vmul.f32 %v693, 0.01
          %v728 = vmul.f32 %v647, 0.01
          %v729 = vmul.f32 %v696, 0.01
          %v730 = vmul.f32 %v649, 0.01
          %v731 = vmul.f32 %v698, 0.01
          %v732 = vmax.f32 %v612, %v700
          %v733 = vmax.f32 %v661, %v701
          %v734 = vmax.f32 %v614, %v702
          %v735 = vmax.f32 %v663, %v703
          %v736 = vmax.f32 %v617, %v704
          %v737 = vmax.f32 %v666, %v705
          %v738 = vmax.f32 %v619, %v706
          %v739 = vmax.f32 %v668, %v707
          %v740 = vmax.f32 %v622, %v708
          %v741 = vmax.f32 %v671, %v709
          %v742 = vmax.f32 %v624, %v710
          %v743 = vmax.f32 %v673, %v711
          %v744 = vmax.f32 %v627, %v712
          %v745 = vmax.f32 %v676, %v713
          %v746 = vmax.f32 %v629, %v714
          %v747 = vmax.f32 %v678, %v715
          %v748 = vmax.f32 %v632, %v716
          %v749 = vmax.f32 %v681, %v717
          %v750 = vmax.f32 %v634, %v718
          %v751 = vmax.f32 %v683, %v719
          %v752 = vmax.f32 %v637, %v720
          %v753 = vmax.f32 %v686, %v721
          %v754 = vmax.f32 %v639, %v722
          %v755 = vmax.f32 %v688, %v723
          %v756 = vmax.f32 %v642, %v724
          %v757 = vmax.f32 %v691, %v725
          %v758 = vmax.f32 %v644, %v726
          %v759 = vmax.f32 %v693, %v727
          %v760 = vmax.f32 %v647, %v728
          %v761 = vmax.f32 %v696, %v729
          %v762 = vmax.f32 %v649, %v730
          %v763 = vmax.f32 %v698, %v731
          %v764 = vpack.c.bf16 %v734, %v732
          %v765 = vpack.c.bf16 %v735, %v733
          %v766 = vpack.c.bf16 %v738, %v736
          %v767 = vpack.c.bf16 %v739, %v737
          %v768 = vpack.c.bf16 %v742, %v740
          %v769 = vpack.c.bf16 %v743, %v741
          %v770 = vpack.c.bf16 %v746, %v744
          %v771 = vpack.c.bf16 %v747, %v745
          %v772 = vpack.c.bf16 %v750, %v748
          %v773 = vpack.c.bf16 %v751, %v749
          %v774 = vpack.c.bf16 %v754, %v752
          %v775 = vpack.c.bf16 %v755, %v753
          %v776 = vpack.c.bf16 %v758, %v756
          %v777 = vpack.c.bf16 %v759, %v757
          %v778 = vpack.c.bf16 %v762, %v760
          %v779 = vpack.c.bf16 %v763, %v761
          %v780 = vld [vmem:[#allocation9] sm:$0xff]
          %v781 = vld [vmem:[#allocation9 + $0x8] sm:$0xff]
          %v782 = vld [vmem:[#allocation9 + $0x10] sm:$0xff]
          %v783 = vld [vmem:[#allocation9 + $0x18] sm:$0xff]
          %v784 = vld [vmem:[#allocation9 + $0x20] sm:$0xff]
          %v785 = vld [vmem:[#allocation9 + $0x28] sm:$0xff]
          %v786 = vld [vmem:[#allocation9 + $0x30] sm:$0xff]
          %v787 = vld [vmem:[#allocation9 + $0x38] sm:$0xff]
          %v788 = vld [vmem:[#allocation9 + $0x40] sm:$0xff]
          %v789 = vld [vmem:[#allocation9 + $0x48] sm:$0xff]
          %v790 = vld [vmem:[#allocation9 + $0x50] sm:$0xff]
          %v791 = vld [vmem:[#allocation9 + $0x58] sm:$0xff]
          %v792 = vld [vmem:[#allocation9 + $0x60] sm:$0xff]
          %v793 = vld [vmem:[#allocation9 + $0x68] sm:$0xff]
          %v794 = vld [vmem:[#allocation9 + $0x70] sm:$0xff]
          %v795 = vld [vmem:[#allocation9 + $0x78] sm:$0xff]
          %v796 = vld [vmem:[#allocation9 + $0x80] sm:$0xff]
          %v797 = vld [vmem:[#allocation9 + $0x88] sm:$0xff]
          %v798 = vld [vmem:[#allocation9 + $0x90] sm:$0xff]
          %v799 = vld [vmem:[#allocation9 + $0x98] sm:$0xff]
          %v800 = vld [vmem:[#allocation9 + $0xa0] sm:$0xff]
          %v801 = vld [vmem:[#allocation9 + $0xa8] sm:$0xff]
          %v802 = vld [vmem:[#allocation9 + $0xb0] sm:$0xff]
          %v803 = vld [vmem:[#allocation9 + $0xb8] sm:$0xff]
          %v804 = vld [vmem:[#allocation9 + $0xc0] sm:$0xff]
          %v805 = vld [vmem:[#allocation9 + $0xc8] sm:$0xff]
          %v806 = vld [vmem:[#allocation9 + $0xd0] sm:$0xff]
          %v807 = vld [vmem:[#allocation9 + $0xd8] sm:$0xff]
          %v808 = vld [vmem:[#allocation9 + $0xe0] sm:$0xff]
          %v809 = vld [vmem:[#allocation9 + $0xe8] sm:$0xff]
          %v810 = vld [vmem:[#allocation9 + $0xf0] sm:$0xff]
          %v811 = vld [vmem:[#allocation9 + $0xf8] sm:$0xff]
          %v812 = vld [vmem:[#allocation11] sm:$0x3]
          %v814 = vperm.slane %v812, 0
          %v815 = vperm.slane %v812, 1
          %v850 = vunpack.c.l.b16 %v780
          %v851 = vunpack.c.h.b16 %v780
          %v852 = vunpack.c.l.b16 %v781
          %v853 = vunpack.c.h.b16 %v781
          %v854 = vunpack.c.l.b16 %v782
          %v855 = vunpack.c.h.b16 %v782
          %v856 = vunpack.c.l.b16 %v783
          %v857 = vunpack.c.h.b16 %v783
          %v858 = vunpack.c.l.b16 %v784
          %v859 = vunpack.c.h.b16 %v784
          %v860 = vunpack.c.l.b16 %v785
          %v861 = vunpack.c.h.b16 %v785
          %v862 = vunpack.c.l.b16 %v786
          %v863 = vunpack.c.h.b16 %v786
          %v864 = vunpack.c.l.b16 %v787
          %v865 = vunpack.c.h.b16 %v787
          %v866 = vunpack.c.l.b16 %v788
          %v867 = vunpack.c.h.b16 %v788
          %v868 = vunpack.c.l.b16 %v789
          %v869 = vunpack.c.h.b16 %v789
          %v870 = vunpack.c.l.b16 %v790
          %v871 = vunpack.c.h.b16 %v790
          %v872 = vunpack.c.l.b16 %v791
          %v873 = vunpack.c.h.b16 %v791
          %v874 = vunpack.c.l.b16 %v792
          %v875 = vunpack.c.h.b16 %v792
          %v876 = vunpack.c.l.b16 %v793
          %v877 = vunpack.c.h.b16 %v793
          %v878 = vunpack.c.l.b16 %v794
          %v879 = vunpack.c.h.b16 %v794
          %v880 = vunpack.c.l.b16 %v795
          %v881 = vunpack.c.h.b16 %v795
          %v882 = vunpack.c.l.b16 %v796
          %v883 = vunpack.c.h.b16 %v796
          %v884 = vunpack.c.l.b16 %v797
          %v885 = vunpack.c.h.b16 %v797
          %v886 = vunpack.c.l.b16 %v798
          %v887 = vunpack.c.h.b16 %v798
          %v888 = vunpack.c.l.b16 %v799
          %v889 = vunpack.c.h.b16 %v799
          %v890 = vunpack.c.l.b16 %v800
          %v891 = vunpack.c.h.b16 %v800
          %v892 = vunpack.c.l.b16 %v801
          %v893 = vunpack.c.h.b16 %v801
          %v894 = vunpack.c.l.b16 %v802
          %v895 = vunpack.c.h.b16 %v802
          %v896 = vunpack.c.l.b16 %v803
          %v897 = vunpack.c.h.b16 %v803
          %v898 = vunpack.c.l.b16 %v804
          %v899 = vunpack.c.h.b16 %v804
          %v900 = vunpack.c.l.b16 %v805
          %v901 = vunpack.c.h.b16 %v805
          %v902 = vunpack.c.l.b16 %v806
          %v903 = vunpack.c.h.b16 %v806
          %v904 = vunpack.c.l.b16 %v807
          %v905 = vunpack.c.h.b16 %v807
          %v906 = vunpack.c.l.b16 %v808
          %v907 = vunpack.c.h.b16 %v808
          %v908 = vunpack.c.l.b16 %v809
          %v909 = vunpack.c.h.b16 %v809
          %v910 = vunpack.c.l.b16 %v810
          %v911 = vunpack.c.h.b16 %v810
          %v912 = vunpack.c.l.b16 %v811
          %v913 = vunpack.c.h.b16 %v811
          %v914 = vpack.c.b16 %v852, %v850
          %v915 = vpack.c.b16 %v853, %v851
          %v916 = vpack.c.b16 %v856, %v854
          %v917 = vpack.c.b16 %v857, %v855
          %v918 = vpack.c.b16 %v860, %v858
          %v919 = vpack.c.b16 %v861, %v859
          %v920 = vpack.c.b16 %v864, %v862
          %v921 = vpack.c.b16 %v865, %v863
          %v922 = vpack.c.b16 %v868, %v866
          %v923 = vpack.c.b16 %v869, %v867
          %v924 = vpack.c.b16 %v872, %v870
          %v925 = vpack.c.b16 %v873, %v871
          %v926 = vpack.c.b16 %v876, %v874
          %v927 = vpack.c.b16 %v877, %v875
          %v928 = vpack.c.b16 %v880, %v878
          %v929 = vpack.c.b16 %v881, %v879
          %v930 = vpack.c.b16 %v884, %v882
          %v931 = vpack.c.b16 %v885, %v883
          %v932 = vpack.c.b16 %v888, %v886
          %v933 = vpack.c.b16 %v889, %v887
          %v934 = vpack.c.b16 %v892, %v890
          %v935 = vpack.c.b16 %v893, %v891
          %v936 = vpack.c.b16 %v896, %v894
          %v937 = vpack.c.b16 %v897, %v895
          %v938 = vpack.c.b16 %v900, %v898
          %v939 = vpack.c.b16 %v901, %v899
          %v940 = vpack.c.b16 %v904, %v902
          %v941 = vpack.c.b16 %v905, %v903
          %v942 = vpack.c.b16 %v908, %v906
          %v943 = vpack.c.b16 %v909, %v907
          %v944 = vpack.c.b16 %v912, %v910
          %v945 = vpack.c.b16 %v913, %v911
          %978 = vmatpush.bf16.msra.mxu0 %v928
          %979 = vmatpush.bf16.msra.mxu0 %v926
          %980 = vmatpush.bf16.msra.mxu0 %v924
          %981 = vmatpush.bf16.msra.mxu0 %v922
          %982 = vmatpush.bf16.msra.mxu0 %v920
          %983 = vmatpush.bf16.msra.mxu0 %v918
          %984 = vmatpush.bf16.msra.mxu0 %v916
          %985 = vmatpush.bf16.msra.mxu0 %v914
          %986 = vmatmul.bf16.gmra.mxu0 %v764
          %v987 = vpop.f32.mrf.mxu0
          %v988 = vadd.f32 %v814, %v987
          %v989 = vpop.f32.mrf.mxu0
          %v990 = vadd.f32 %v814, %v989
          %991 = vmatmul.bf16.gmra.mxu0 %v766
          %v992 = vpop.f32.mrf.mxu0
          %v993 = vadd.f32 %v814, %v992
          %v994 = vpop.f32.mrf.mxu0
          %v995 = vadd.f32 %v814, %v994
          %996 = vmatmul.bf16.gmra.mxu0 %v768
          %v997 = vpop.f32.mrf.mxu0
          %v998 = vadd.f32 %v814, %v997
          %v999 = vpop.f32.mrf.mxu0
          %v1000 = vadd.f32 %v814, %v999
          %1001 = vmatmul.bf16.gmra.mxu0 %v770
          %v1002 = vpop.f32.mrf.mxu0
          %v1003 = vadd.f32 %v814, %v1002
          %v1004 = vpop.f32.mrf.mxu0
          %v1005 = vadd.f32 %v814, %v1004
          %1006 = vmatmul.bf16.gmra.mxu0 %v772
          %v1007 = vpop.f32.mrf.mxu0
          %v1008 = vadd.f32 %v814, %v1007
          %v1009 = vpop.f32.mrf.mxu0
          %v1010 = vadd.f32 %v814, %v1009
          %1011 = vmatmul.bf16.gmra.mxu0 %v774
          %v1012 = vpop.f32.mrf.mxu0
          %v1013 = vadd.f32 %v814, %v1012
          %v1014 = vpop.f32.mrf.mxu0
          %v1015 = vadd.f32 %v814, %v1014
          %1016 = vmatmul.bf16.gmra.mxu0 %v776
          %v1017 = vpop.f32.mrf.mxu0
          %v1018 = vadd.f32 %v814, %v1017
          %v1019 = vpop.f32.mrf.mxu0
          %v1020 = vadd.f32 %v814, %v1019
          %1021 = vmatmul.bf16.gmra.mxu0 %v778
          %v1022 = vpop.f32.mrf.mxu0
          %v1023 = vadd.f32 %v814, %v1022
          %v1024 = vpop.f32.mrf.mxu0
          %v1025 = vadd.f32 %v814, %v1024
          %1026 = vdwg.mxu0
          %1027 = vmatpush.bf16.msra.mxu0 %v944
          %1028 = vmatpush.bf16.msra.mxu0 %v942
          %1029 = vmatpush.bf16.msra.mxu0 %v940
          %1030 = vmatpush.bf16.msra.mxu0 %v938
          %1031 = vmatpush.bf16.msra.mxu0 %v936
          %1032 = vmatpush.bf16.msra.mxu0 %v934
          %1033 = vmatpush.bf16.msra.mxu0 %v932
          %1034 = vmatpush.bf16.msra.mxu0 %v930
          %1035 = vmatmul.bf16.gmra.mxu0 %v765
          %v1036 = vpop.f32.mrf.mxu0
          %v1037 = vadd.f32 %v988, %v1036
          %v1038 = vpop.f32.mrf.mxu0
          %v1039 = vadd.f32 %v990, %v1038
          %1040 = vmatmul.bf16.gmra.mxu0 %v767
          %v1041 = vpop.f32.mrf.mxu0
          %v1042 = vadd.f32 %v993, %v1041
          %v1043 = vpop.f32.mrf.mxu0
          %v1044 = vadd.f32 %v995, %v1043
          %1045 = vmatmul.bf16.gmra.mxu0 %v769
          %v1046 = vpop.f32.mrf.mxu0
          %v1047 = vadd.f32 %v998, %v1046
          %v1048 = vpop.f32.mrf.mxu0
          %v1049 = vadd.f32 %v1000, %v1048
          %1050 = vmatmul.bf16.gmra.mxu0 %v771
          %v1051 = vpop.f32.mrf.mxu0
          %v1052 = vadd.f32 %v1003, %v1051
          %v1053 = vpop.f32.mrf.mxu0
          %v1054 = vadd.f32 %v1005, %v1053
          %1055 = vmatmul.bf16.gmra.mxu0 %v773
          %v1056 = vpop.f32.mrf.mxu0
          %v1057 = vadd.f32 %v1008, %v1056
          %v1058 = vpop.f32.mrf.mxu0
          %v1059 = vadd.f32 %v1010, %v1058
          %1060 = vmatmul.bf16.gmra.mxu0 %v775
          %v1061 = vpop.f32.mrf.mxu0
          %v1062 = vadd.f32 %v1013, %v1061
          %v1063 = vpop.f32.mrf.mxu0
          %v1064 = vadd.f32 %v1015, %v1063
          %1065 = vmatmul.bf16.gmra.mxu0 %v777
          %v1066 = vpop.f32.mrf.mxu0
          %v1067 = vadd.f32 %v1018, %v1066
          %v1068 = vpop.f32.mrf.mxu0
          %v1069 = vadd.f32 %v1020, %v1068
          %1070 = vmatmul.bf16.gmra.mxu0 %v779
          %v1071 = vpop.f32.mrf.mxu0
          %v1072 = vadd.f32 %v1023, %v1071
          %v1073 = vpop.f32.mrf.mxu0
          %v1074 = vadd.f32 %v1025, %v1073
          %1075 = vdwg.mxu0
          %1076 = vmatpush.bf16.msra.mxu0 %v929
          %1077 = vmatpush.bf16.msra.mxu0 %v927
          %1078 = vmatpush.bf16.msra.mxu0 %v925
          %1079 = vmatpush.bf16.msra.mxu0 %v923
          %1080 = vmatpush.bf16.msra.mxu0 %v921
          %1081 = vmatpush.bf16.msra.mxu0 %v919
          %1082 = vmatpush.bf16.msra.mxu0 %v917
          %1083 = vmatpush.bf16.msra.mxu0 %v915
          %1084 = vmatmul.bf16.gmra.mxu0 %v764
          %v1085 = vpop.f32.mrf.mxu0
          %v1086 = vadd.f32 %v815, %v1085
          %v1087 = vpop.f32.mrf.mxu0
          %v1088 = vadd.f32 %v815, %v1087
          %1089 = vmatmul.bf16.gmra.mxu0 %v766
          %v1090 = vpop.f32.mrf.mxu0
          %v1091 = vadd.f32 %v815, %v1090
          %v1092 = vpop.f32.mrf.mxu0
          %v1093 = vadd.f32 %v815, %v1092
          %1094 = vmatmul.bf16.gmra.mxu0 %v768
          %v1095 = vpop.f32.mrf.mxu0
          %v1096 = vadd.f32 %v815, %v1095
          %v1097 = vpop.f32.mrf.mxu0
          %v1098 = vadd.f32 %v815, %v1097
          %1099 = vmatmul.bf16.gmra.mxu0 %v770
          %v1100 = vpop.f32.mrf.mxu0
          %v1101 = vadd.f32 %v815, %v1100
          %v1102 = vpop.f32.mrf.mxu0
          %v1103 = vadd.f32 %v815, %v1102
          %1104 = vmatmul.bf16.gmra.mxu0 %v772
          %v1105 = vpop.f32.mrf.mxu0
          %v1106 = vadd.f32 %v815, %v1105
          %v1107 = vpop.f32.mrf.mxu0
          %v1108 = vadd.f32 %v815, %v1107
          %1109 = vmatmul.bf16.gmra.mxu0 %v774
          %v1110 = vpop.f32.mrf.mxu0
          %v1111 = vadd.f32 %v815, %v1110
          %v1112 = vpop.f32.mrf.mxu0
          %v1113 = vadd.f32 %v815, %v1112
          %1114 = vmatmul.bf16.gmra.mxu0 %v776
          %v1115 = vpop.f32.mrf.mxu0
          %v1116 = vadd.f32 %v815, %v1115
          %v1117 = vpop.f32.mrf.mxu0
          %v1118 = vadd.f32 %v815, %v1117
          %1119 = vmatmul.bf16.gmra.mxu0 %v778
          %v1120 = vpop.f32.mrf.mxu0
          %v1121 = vadd.f32 %v815, %v1120
          %v1122 = vpop.f32.mrf.mxu0
          %v1123 = vadd.f32 %v815, %v1122
          %1124 = vdwg.mxu0
          %1125 = vmatpush.bf16.msra.mxu0 %v945
          %1126 = vmatpush.bf16.msra.mxu0 %v943
          %1127 = vmatpush.bf16.msra.mxu0 %v941
          %1128 = vmatpush.bf16.msra.mxu0 %v939
          %1129 = vmatpush.bf16.msra.mxu0 %v937
          %1130 = vmatpush.bf16.msra.mxu0 %v935
          %1131 = vmatpush.bf16.msra.mxu0 %v933
          %1132 = vmatpush.bf16.msra.mxu0 %v931
          %1133 = vmatmul.bf16.gmra.mxu0 %v765
          %v1134 = vpop.f32.mrf.mxu0
          %v1135 = vadd.f32 %v1086, %v1134
          %v1136 = vpop.f32.mrf.mxu0
          %v1137 = vadd.f32 %v1088, %v1136
          %1138 = vmatmul.bf16.gmra.mxu0 %v767
          %v1139 = vpop.f32.mrf.mxu0
          %v1140 = vadd.f32 %v1091, %v1139
          %v1141 = vpop.f32.mrf.mxu0
          %v1142 = vadd.f32 %v1093, %v1141
          %1143 = vmatmul.bf16.gmra.mxu0 %v769
          %v1144 = vpop.f32.mrf.mxu0
          %v1145 = vadd.f32 %v1096, %v1144
          %v1146 = vpop.f32.mrf.mxu0
          %v1147 = vadd.f32 %v1098, %v1146
          %1148 = vmatmul.bf16.gmra.mxu0 %v771
          %v1149 = vpop.f32.mrf.mxu0
          %v1150 = vadd.f32 %v1101, %v1149
          %v1151 = vpop.f32.mrf.mxu0
          %v1152 = vadd.f32 %v1103, %v1151
          %1153 = vmatmul.bf16.gmra.mxu0 %v773
          %v1154 = vpop.f32.mrf.mxu0
          %v1155 = vadd.f32 %v1106, %v1154
          %v1156 = vpop.f32.mrf.mxu0
          %v1157 = vadd.f32 %v1108, %v1156
          %1158 = vmatmul.bf16.gmra.mxu0 %v775
          %v1159 = vpop.f32.mrf.mxu0
          %v1160 = vadd.f32 %v1111, %v1159
          %v1161 = vpop.f32.mrf.mxu0
          %v1162 = vadd.f32 %v1113, %v1161
          %1163 = vmatmul.bf16.gmra.mxu0 %v777
          %v1164 = vpop.f32.mrf.mxu0
          %v1165 = vadd.f32 %v1116, %v1164
          %v1166 = vpop.f32.mrf.mxu0
          %v1167 = vadd.f32 %v1118, %v1166
          %1168 = vmatmul.bf16.gmra.mxu0 %v779
          %v1169 = vpop.f32.mrf.mxu0
          %v1170 = vadd.f32 %v1121, %v1169
          %v1171 = vpop.f32.mrf.mxu0
          %v1172 = vadd.f32 %v1123, %v1171
          %1173 = vdwg.mxu0
          %v1174 = vmul.f32 %v1037, 0.01
          %v1175 = vmul.f32 %v1135, 0.01
          %v1176 = vmul.f32 %v1039, 0.01
          %v1177 = vmul.f32 %v1137, 0.01
          %v1178 = vmul.f32 %v1042, 0.01
          %v1179 = vmul.f32 %v1140, 0.01
          %v1180 = vmul.f32 %v1044, 0.01
          %v1181 = vmul.f32 %v1142, 0.01
          %v1182 = vmul.f32 %v1047, 0.01
          %v1183 = vmul.f32 %v1145, 0.01
          %v1184 = vmul.f32 %v1049, 0.01
          %v1185 = vmul.f32 %v1147, 0.01
          %v1186 = vmul.f32 %v1052, 0.01
          %v1187 = vmul.f32 %v1150, 0.01
          %v1188 = vmul.f32 %v1054, 0.01
          %v1189 = vmul.f32 %v1152, 0.01
          %v1190 = vmul.f32 %v1057, 0.01
          %v1191 = vmul.f32 %v1155, 0.01
          %v1192 = vmul.f32 %v1059, 0.01
          %v1193 = vmul.f32 %v1157, 0.01
          %v1194 = vmul.f32 %v1062, 0.01
          %v1195 = vmul.f32 %v1160, 0.01
          %v1196 = vmul.f32 %v1064, 0.01
          %v1197 = vmul.f32 %v1162, 0.01
          %v1198 = vmul.f32 %v1067, 0.01
          %v1199 = vmul.f32 %v1165, 0.01
          %v1200 = vmul.f32 %v1069, 0.01
          %v1201 = vmul.f32 %v1167, 0.01
          %v1202 = vmul.f32 %v1072, 0.01
          %v1203 = vmul.f32 %v1170, 0.01
          %v1204 = vmul.f32 %v1074, 0.01
          %v1205 = vmul.f32 %v1172, 0.01
          %v1206 = vmax.f32 %v1037, %v1174
          %v1207 = vmax.f32 %v1135, %v1175
          %v1208 = vmax.f32 %v1039, %v1176
          %v1209 = vmax.f32 %v1137, %v1177
          %v1210 = vmax.f32 %v1042, %v1178
          %v1211 = vmax.f32 %v1140, %v1179
          %v1212 = vmax.f32 %v1044, %v1180
          %v1213 = vmax.f32 %v1142, %v1181
          %v1214 = vmax.f32 %v1047, %v1182
          %v1215 = vmax.f32 %v1145, %v1183
          %v1216 = vmax.f32 %v1049, %v1184
          %v1217 = vmax.f32 %v1147, %v1185
          %v1218 = vmax.f32 %v1052, %v1186
          %v1219 = vmax.f32 %v1150, %v1187
          %v1220 = vmax.f32 %v1054, %v1188
          %v1221 = vmax.f32 %v1152, %v1189
          %v1222 = vmax.f32 %v1057, %v1190
          %v1223 = vmax.f32 %v1155, %v1191
          %v1224 = vmax.f32 %v1059, %v1192
          %v1225 = vmax.f32 %v1157, %v1193
          %v1226 = vmax.f32 %v1062, %v1194
          %v1227 = vmax.f32 %v1160, %v1195
          %v1228 = vmax.f32 %v1064, %v1196
          %v1229 = vmax.f32 %v1162, %v1197
          %v1230 = vmax.f32 %v1067, %v1198
          %v1231 = vmax.f32 %v1165, %v1199
          %v1232 = vmax.f32 %v1069, %v1200
          %v1233 = vmax.f32 %v1167, %v1201
          %v1234 = vmax.f32 %v1072, %v1202
          %v1235 = vmax.f32 %v1170, %v1203
          %v1236 = vmax.f32 %v1074, %v1204
          %v1237 = vmax.f32 %v1172, %v1205
          %v1238 = vpack.c.bf16 %v1207, %v1206
          %v1239 = vpack.c.bf16 %v1209, %v1208
          %v1240 = vpack.c.bf16 %v1211, %v1210
          %v1241 = vpack.c.bf16 %v1213, %v1212
          %v1242 = vpack.c.bf16 %v1215, %v1214
          %v1243 = vpack.c.bf16 %v1217, %v1216
          %v1244 = vpack.c.bf16 %v1219, %v1218
          %v1245 = vpack.c.bf16 %v1221, %v1220
          %v1246 = vpack.c.bf16 %v1223, %v1222
          %v1247 = vpack.c.bf16 %v1225, %v1224
          %v1248 = vpack.c.bf16 %v1227, %v1226
          %v1249 = vpack.c.bf16 %v1229, %v1228
          %v1250 = vpack.c.bf16 %v1231, %v1230
          %v1251 = vpack.c.bf16 %v1233, %v1232
          %v1252 = vpack.c.bf16 %v1235, %v1234
          %v1253 = vpack.c.bf16 %v1237, %v1236
          %1254 = vst [vmem:[#allocation2] sm:$0xff] %v1238
          %1255 = vst [vmem:[#allocation2 + $0x8] sm:$0xff] %v1239
          %1256 = vst [vmem:[#allocation2 + $0x10] sm:$0xff] %v1240
          %1257 = vst [vmem:[#allocation2 + $0x18] sm:$0xff] %v1241
          %1258 = vst [vmem:[#allocation2 + $0x20] sm:$0xff] %v1242
          %1259 = vst [vmem:[#allocation2 + $0x28] sm:$0xff] %v1243
          %1260 = vst [vmem:[#allocation2 + $0x30] sm:$0xff] %v1244
          %1261 = vst [vmem:[#allocation2 + $0x38] sm:$0xff] %v1245
          %1262 = vst [vmem:[#allocation2 + $0x40] sm:$0xff] %v1246
          %1263 = vst [vmem:[#allocation2 + $0x48] sm:$0xff] %v1247
          %1264 = vst [vmem:[#allocation2 + $0x50] sm:$0xff] %v1248
          %1265 = vst [vmem:[#allocation2 + $0x58] sm:$0xff] %v1249
          %1266 = vst [vmem:[#allocation2 + $0x60] sm:$0xff] %v1250
          %1267 = vst [vmem:[#allocation2 + $0x68] sm:$0xff] %v1251
          %1268 = vst [vmem:[#allocation2 + $0x70] sm:$0xff] %v1252
          %1269 = vst [vmem:[#allocation2 + $0x78] sm:$0xff] %v1253
        $region76: #{_generator0_pallas.1} parent=47 // pred_fallthru
          _
        %v1270 = vld [vmem:[#allocation2] sm:$0xff]
        %v1271 = vld [vmem:[#allocation2 + $0x8] sm:$0xff]
        %v1272 = vld [vmem:[#allocation2 + $0x10] sm:$0xff]
        %v1273 = vld [vmem:[#allocation2 + $0x18] sm:$0xff]
        %v1274 = vld [vmem:[#allocation2 + $0x20] sm:$0xff]
        %v1275 = vld [vmem:[#allocation2 + $0x28] sm:$0xff]
        %v1276 = vld [vmem:[#allocation2 + $0x30] sm:$0xff]
        %v1277 = vld [vmem:[#allocation2 + $0x38] sm:$0xff]
        %v1278 = vld [vmem:[#allocation2 + $0x40] sm:$0xff]
        %v1279 = vld [vmem:[#allocation2 + $0x48] sm:$0xff]
        %v1280 = vld [vmem:[#allocation2 + $0x50] sm:$0xff]
        %v1281 = vld [vmem:[#allocation2 + $0x58] sm:$0xff]
        %v1282 = vld [vmem:[#allocation2 + $0x60] sm:$0xff]
        %v1283 = vld [vmem:[#allocation2 + $0x68] sm:$0xff]
        %v1284 = vld [vmem:[#allocation2 + $0x70] sm:$0xff]
        %v1285 = vld [vmem:[#allocation2 + $0x78] sm:$0xff]
        %v1286 = vld [vmem:[%s387] sm:$0xf]
        %v1287 = vld [vmem:[%s387 + $0x4] sm:$0xf]
        %v1288 = vld [vmem:[%s387 + $0x8] sm:$0xf]
        %v1289 = vld [vmem:[%s387 + $0xc] sm:$0xf]
        %v1290 = vld [vmem:[%s387 + $0x10] sm:$0xf]
        %v1291 = vld [vmem:[%s387 + $0x14] sm:$0xf]
        %v1292 = vld [vmem:[%s387 + $0x18] sm:$0xf]
        %v1293 = vld [vmem:[%s387 + $0x1c] sm:$0xf]
        %v1294 = vld [vmem:[%s387 + $0x20] sm:$0xf]
        %v1295 = vld [vmem:[%s387 + $0x24] sm:$0xf]
        %v1296 = vld [vmem:[%s387 + $0x28] sm:$0xf]
        %v1297 = vld [vmem:[%s387 + $0x2c] sm:$0xf]
        %v1298 = vld [vmem:[%s387 + $0x30] sm:$0xf]
        %v1299 = vld [vmem:[%s387 + $0x34] sm:$0xf]
        %v1300 = vld [vmem:[%s387 + $0x38] sm:$0xf]
        %v1301 = vld [vmem:[%s387 + $0x3c] sm:$0xf]
        %v1302 = vld [vmem:[%s387 + $0x40] sm:$0xf]
        %v1303 = vld [vmem:[%s387 + $0x44] sm:$0xf]
        %v1304 = vld [vmem:[%s387 + $0x48] sm:$0xf]
        %v1305 = vld [vmem:[%s387 + $0x4c] sm:$0xf]
        %v1306 = vld [vmem:[%s387 + $0x50] sm:$0xf]
        %v1307 = vld [vmem:[%s387 + $0x54] sm:$0xf]
        %v1308 = vld [vmem:[%s387 + $0x58] sm:$0xf]
        %v1309 = vld [vmem:[%s387 + $0x5c] sm:$0xf]
        %v1310 = vld [vmem:[%s387 + $0x60] sm:$0xf]
        %v1311 = vld [vmem:[%s387 + $0x64] sm:$0xf]
        %v1312 = vld [vmem:[%s387 + $0x68] sm:$0xf]
        %v1313 = vld [vmem:[%s387 + $0x6c] sm:$0xf]
        %v1314 = vld [vmem:[%s387 + $0x70] sm:$0xf]
        %v1315 = vld [vmem:[%s387 + $0x74] sm:$0xf]
        %v1316 = vld [vmem:[%s387 + $0x78] sm:$0xf]
        %v1317 = vld [vmem:[%s387 + $0x7c] sm:$0xf]
        %v1318 = vld [vmem:[%s430] sm:$0x1]
        %v1320 = vperm.slane %v1318, 0
        %v1338 = vunpack.c.l.b16 %v1270
        %v1339 = vunpack.c.h.b16 %v1270
        %v1340 = vunpack.c.l.b16 %v1271
        %v1341 = vunpack.c.h.b16 %v1271
        %v1342 = vunpack.c.l.b16 %v1272
        %v1343 = vunpack.c.h.b16 %v1272
        %v1344 = vunpack.c.l.b16 %v1273
        %v1345 = vunpack.c.h.b16 %v1273
        %v1346 = vunpack.c.l.b16 %v1274
        %v1347 = vunpack.c.h.b16 %v1274
        %v1348 = vunpack.c.l.b16 %v1275
        %v1349 = vunpack.c.h.b16 %v1275
        %v1350 = vunpack.c.l.b16 %v1276
        %v1351 = vunpack.c.h.b16 %v1276
        %v1352 = vunpack.c.l.b16 %v1277
        %v1353 = vunpack.c.h.b16 %v1277
        %v1354 = vunpack.c.l.b16 %v1278
        %v1355 = vunpack.c.h.b16 %v1278
        %v1356 = vunpack.c.l.b16 %v1279
        %v1357 = vunpack.c.h.b16 %v1279
        %v1358 = vunpack.c.l.b16 %v1280
        %v1359 = vunpack.c.h.b16 %v1280
        %v1360 = vunpack.c.l.b16 %v1281
        %v1361 = vunpack.c.h.b16 %v1281
        %v1362 = vunpack.c.l.b16 %v1282
        %v1363 = vunpack.c.h.b16 %v1282
        %v1364 = vunpack.c.l.b16 %v1283
        %v1365 = vunpack.c.h.b16 %v1283
        %v1366 = vunpack.c.l.b16 %v1284
        %v1367 = vunpack.c.h.b16 %v1284
        %v1368 = vunpack.c.l.b16 %v1285
        %v1369 = vunpack.c.h.b16 %v1285
        %v1370 = vpack.c.b16 %v1340, %v1338
        %v1371 = vpack.c.b16 %v1341, %v1339
        %v1372 = vpack.c.b16 %v1344, %v1342
        %v1373 = vpack.c.b16 %v1345, %v1343
        %v1374 = vpack.c.b16 %v1348, %v1346
        %v1375 = vpack.c.b16 %v1349, %v1347
        %v1376 = vpack.c.b16 %v1352, %v1350
        %v1377 = vpack.c.b16 %v1353, %v1351
        %v1378 = vpack.c.b16 %v1356, %v1354
        %v1379 = vpack.c.b16 %v1357, %v1355
        %v1380 = vpack.c.b16 %v1360, %v1358
        %v1381 = vpack.c.b16 %v1361, %v1359
        %v1382 = vpack.c.b16 %v1364, %v1362
        %v1383 = vpack.c.b16 %v1365, %v1363
        %v1384 = vpack.c.b16 %v1368, %v1366
        %v1385 = vpack.c.b16 %v1369, %v1367
        %v1434 = vunpack.c.l.b16 %v1286
        %v1435 = vunpack.c.l.b16 %v1287
        %v1436 = vunpack.c.l.b16 %v1288
        %v1437 = vunpack.c.l.b16 %v1289
        %v1438 = vunpack.c.l.b16 %v1290
        %v1439 = vunpack.c.l.b16 %v1291
        %v1440 = vunpack.c.l.b16 %v1292
        %v1441 = vunpack.c.l.b16 %v1293
        %v1442 = vunpack.c.l.b16 %v1294
        %v1443 = vunpack.c.l.b16 %v1295
        %v1444 = vunpack.c.l.b16 %v1296
        %v1445 = vunpack.c.l.b16 %v1297
        %v1446 = vunpack.c.l.b16 %v1298
        %v1447 = vunpack.c.l.b16 %v1299
        %v1448 = vunpack.c.l.b16 %v1300
        %v1449 = vunpack.c.l.b16 %v1301
        %v1450 = vunpack.c.l.b16 %v1302
        %v1451 = vunpack.c.l.b16 %v1303
        %v1452 = vunpack.c.l.b16 %v1304
        %v1453 = vunpack.c.l.b16 %v1305
        %v1454 = vunpack.c.l.b16 %v1306
        %v1455 = vunpack.c.l.b16 %v1307
        %v1456 = vunpack.c.l.b16 %v1308
        %v1457 = vunpack.c.l.b16 %v1309
        %v1458 = vunpack.c.l.b16 %v1310
        %v1459 = vunpack.c.l.b16 %v1311
        %v1460 = vunpack.c.l.b16 %v1312
        %v1461 = vunpack.c.l.b16 %v1313
        %v1462 = vunpack.c.l.b16 %v1314
        %v1463 = vunpack.c.l.b16 %v1315
        %v1464 = vunpack.c.l.b16 %v1316
        %v1465 = vunpack.c.l.b16 %v1317
        %v1466 = vpack.c.b16 %v1435, %v1434
        %v1467 = vpack.c.b16 %v1437, %v1436
        %v1468 = vpack.c.b16 %v1439, %v1438
        %v1469 = vpack.c.b16 %v1441, %v1440
        %v1470 = vpack.c.b16 %v1443, %v1442
        %v1471 = vpack.c.b16 %v1445, %v1444
        %v1472 = vpack.c.b16 %v1447, %v1446
        %v1473 = vpack.c.b16 %v1449, %v1448
        %v1474 = vpack.c.b16 %v1451, %v1450
        %v1475 = vpack.c.b16 %v1453, %v1452
        %v1476 = vpack.c.b16 %v1455, %v1454
        %v1477 = vpack.c.b16 %v1457, %v1456
        %v1478 = vpack.c.b16 %v1459, %v1458
        %v1479 = vpack.c.b16 %v1461, %v1460
        %v1480 = vpack.c.b16 %v1463, %v1462
        %v1481 = vpack.c.b16 %v1465, %v1464
        %1498 = vmatpush.bf16.msra.mxu0 %v1473
        %1499 = vmatpush.bf16.msra.mxu0 %v1472
        %1500 = vmatpush.bf16.msra.mxu0 %v1471
        %1501 = vmatpush.bf16.msra.mxu0 %v1470
        %1502 = vmatpush.bf16.msra.mxu0 %v1469
        %1503 = vmatpush.bf16.msra.mxu0 %v1468
        %1504 = vmatpush.bf16.msra.mxu0 %v1467
        %1505 = vmatpush.bf16.msra.mxu0 %v1466
        %1506 = vmatmul.bf16.gmra.mxu0 %v1370
        %v1507 = vpop.f32.mrf.mxu0
        %v1508 = vadd.f32 %v1320, %v1507
        %v1509 = vpop.f32.mrf.mxu0
        %v1510 = vadd.f32 %v1320, %v1509
        %1511 = vmatmul.bf16.gmra.mxu0 %v1372
        %v1512 = vpop.f32.mrf.mxu0
        %v1513 = vadd.f32 %v1320, %v1512
        %v1514 = vpop.f32.mrf.mxu0
        %v1515 = vadd.f32 %v1320, %v1514
        %1516 = vmatmul.bf16.gmra.mxu0 %v1374
        %v1517 = vpop.f32.mrf.mxu0
        %v1518 = vadd.f32 %v1320, %v1517
        %v1519 = vpop.f32.mrf.mxu0
        %v1520 = vadd.f32 %v1320, %v1519
        %1521 = vmatmul.bf16.gmra.mxu0 %v1376
        %v1522 = vpop.f32.mrf.mxu0
        %v1523 = vadd.f32 %v1320, %v1522
        %v1524 = vpop.f32.mrf.mxu0
        %v1525 = vadd.f32 %v1320, %v1524
        %1526 = vmatmul.bf16.gmra.mxu0 %v1378
        %v1527 = vpop.f32.mrf.mxu0
        %v1528 = vadd.f32 %v1320, %v1527
        %v1529 = vpop.f32.mrf.mxu0
        %v1530 = vadd.f32 %v1320, %v1529
        %1531 = vmatmul.bf16.gmra.mxu0 %v1380
        %v1532 = vpop.f32.mrf.mxu0
        %v1533 = vadd.f32 %v1320, %v1532
        %v1534 = vpop.f32.mrf.mxu0
        %v1535 = vadd.f32 %v1320, %v1534
        %1536 = vmatmul.bf16.gmra.mxu0 %v1382
        %v1537 = vpop.f32.mrf.mxu0
        %v1538 = vadd.f32 %v1320, %v1537
        %v1539 = vpop.f32.mrf.mxu0
        %v1540 = vadd.f32 %v1320, %v1539
        %1541 = vmatmul.bf16.gmra.mxu0 %v1384
        %v1542 = vpop.f32.mrf.mxu0
        %v1543 = vadd.f32 %v1320, %v1542
        %v1544 = vpop.f32.mrf.mxu0
        %v1545 = vadd.f32 %v1320, %v1544
        %1546 = vdwg.mxu0
        %1547 = vmatpush.bf16.msra.mxu0 %v1481
        %1548 = vmatpush.bf16.msra.mxu0 %v1480
        %1549 = vmatpush.bf16.msra.mxu0 %v1479
        %1550 = vmatpush.bf16.msra.mxu0 %v1478
        %1551 = vmatpush.bf16.msra.mxu0 %v1477
        %1552 = vmatpush.bf16.msra.mxu0 %v1476
        %1553 = vmatpush.bf16.msra.mxu0 %v1475
        %1554 = vmatpush.bf16.msra.mxu0 %v1474
        %1555 = vmatmul.bf16.gmra.mxu0 %v1371
        %v1556 = vpop.f32.mrf.mxu0
        %v1557 = vadd.f32 %v1508, %v1556
        %v1558 = vpop.f32.mrf.mxu0
        %v1559 = vadd.f32 %v1510, %v1558
        %1560 = vmatmul.bf16.gmra.mxu0 %v1373
        %v1561 = vpop.f32.mrf.mxu0
        %v1562 = vadd.f32 %v1513, %v1561
        %v1563 = vpop.f32.mrf.mxu0
        %v1564 = vadd.f32 %v1515, %v1563
        %1565 = vmatmul.bf16.gmra.mxu0 %v1375
        %v1566 = vpop.f32.mrf.mxu0
        %v1567 = vadd.f32 %v1518, %v1566
        %v1568 = vpop.f32.mrf.mxu0
        %v1569 = vadd.f32 %v1520, %v1568
        %1570 = vmatmul.bf16.gmra.mxu0 %v1377
        %v1571 = vpop.f32.mrf.mxu0
        %v1572 = vadd.f32 %v1523, %v1571
        %v1573 = vpop.f32.mrf.mxu0
        %v1574 = vadd.f32 %v1525, %v1573
        %1575 = vmatmul.bf16.gmra.mxu0 %v1379
        %v1576 = vpop.f32.mrf.mxu0
        %v1577 = vadd.f32 %v1528, %v1576
        %v1578 = vpop.f32.mrf.mxu0
        %v1579 = vadd.f32 %v1530, %v1578
        %1580 = vmatmul.bf16.gmra.mxu0 %v1381
        %v1581 = vpop.f32.mrf.mxu0
        %v1582 = vadd.f32 %v1533, %v1581
        %v1583 = vpop.f32.mrf.mxu0
        %v1584 = vadd.f32 %v1535, %v1583
        %1585 = vmatmul.bf16.gmra.mxu0 %v1383
        %v1586 = vpop.f32.mrf.mxu0
        %v1587 = vadd.f32 %v1538, %v1586
        %v1588 = vpop.f32.mrf.mxu0
        %v1589 = vadd.f32 %v1540, %v1588
        %1590 = vmatmul.bf16.gmra.mxu0 %v1385
        %v1591 = vpop.f32.mrf.mxu0
        %v1592 = vadd.f32 %v1543, %v1591
        %v1593 = vpop.f32.mrf.mxu0
        %v1594 = vadd.f32 %v1545, %v1593
        %1595 = vdwg.mxu0
        %v1596 = vtanh.pop %v1557
        %v1597 = vtanh.pop %v1559
        %v1598 = vtanh.pop %v1562
        %v1599 = vtanh.pop %v1564
        %v1600 = vtanh.pop %v1567
        %v1601 = vtanh.pop %v1569
        %v1602 = vtanh.pop %v1572
        %v1603 = vtanh.pop %v1574
        %v1604 = vtanh.pop %v1577
        %v1605 = vtanh.pop %v1579
        %v1606 = vtanh.pop %v1582
        %v1607 = vtanh.pop %v1584
        %v1608 = vtanh.pop %v1587
        %v1609 = vtanh.pop %v1589
        %v1610 = vtanh.pop %v1592
        %v1611 = vtanh.pop %v1594
        %1612 = vst [vmem:[%s426] sm:$0xff] %v1596
        %1613 = vst [vmem:[%s426 + $0x8] sm:$0xff] %v1597
        %1614 = vst [vmem:[%s426 + $0x10] sm:$0xff] %v1598
        %1615 = vst [vmem:[%s426 + $0x18] sm:$0xff] %v1599
        %1616 = vst [vmem:[%s426 + $0x20] sm:$0xff] %v1600
        %1617 = vst [vmem:[%s426 + $0x28] sm:$0xff] %v1601
        %1618 = vst [vmem:[%s426 + $0x30] sm:$0xff] %v1602
        %1619 = vst [vmem:[%s426 + $0x38] sm:$0xff] %v1603
        %1620 = vst [vmem:[%s426 + $0x40] sm:$0xff] %v1604
        %1621 = vst [vmem:[%s426 + $0x48] sm:$0xff] %v1605
        %1622 = vst [vmem:[%s426 + $0x50] sm:$0xff] %v1606
        %1623 = vst [vmem:[%s426 + $0x58] sm:$0xff] %v1607
        %1624 = vst [vmem:[%s426 + $0x60] sm:$0xff] %v1608
        %1625 = vst [vmem:[%s426 + $0x68] sm:$0xff] %v1609
        %1626 = vst [vmem:[%s426 + $0x70] sm:$0xff] %v1610
        %1627 = vst [vmem:[%s426 + $0x78] sm:$0xff] %v1611
        %s1628 = sand.u32 %s213, 1
        %s1629 = scalar_lea.sflag [#allocation5], %s1628
        %s1630 = sand.u32 %s213, 1
        %s1631 = smul.addr %s1630, 128
        %s1632 = scalar_lea.vmem [#allocation14], %s1631
        // Predicated region
        $region77: #{_generator0_pallas.1} parent=47 // pred_check
          %p1633 = pneg %p223
        $region78: #{_generator0_pallas.1} parent=47 // pred_check_branch
          %1635 = sbr.rel (%p1633) target = $region80
        $region79: #{_generator0_pallas.1} parent=47 // pred_region
          %s1636 = smul.u32 16, %s33
          %1638 = vsyncadd %s1629, 0
          %s1639 = smul.addr %s1636, 4
          %s1640 = sadd.s32 %s34, %s1639
          %s1641 = smul.addr %s1640, 8
          %s1642 = scalar_lea.hbm %s7, %s1641
          %s1643 = sshll.u32 %s1632, 4
          %s1644 = int_to_ptr.vmem [resolvable:$true] %s1643
          %s1645 = sshll.u32 %s1642, 4
          %s1646 = int_to_ptr.hbm [resolvable:$true] %s1645
          %1651 = dma.vmem_to_hbm [thread:$0]  %s1644, 2048, %s1646, %s1629, 128, 512, 8
        $region80: #{_generator0_pallas.1} parent=47 // pred_fallthru
          _
      $region48: #{_generator0_pallas.1} parent=5 // pred_fallthru
        _
      %p1652 = scmp.le.s32.totalorder 2, %s24
      // Predicated region
      $region81: #{_generator0_pallas.1} parent=5 // pred_check
        %p1653 = pneg %p1652
      $region82: #{_generator0_pallas.1} parent=5 // pred_check_branch
        %1655 = sbr.rel (%p1653) target = $region84
      $region83: #{_generator0_pallas.1} parent=5 // pred_region
        %s1656 = ssub.s32 %s24, 2
        // Predicated region
        $region85: #{_generator0_pallas.1} parent=83 // pred_check
          %p1657 = pneg %p229
        $region86: #{_generator0_pallas.1} parent=83 // pred_check_branch
          %1659 = sbr.rel (%p1657) target = $region88
        $region87: #{_generator0_pallas.1} parent=83 // pred_region
          %s1660 = sand.u32 %s214, 1
          %s1661 = scalar_lea.sflag [#allocation5], %s1660
          %s1662 = sand.u32 %s214, 1
          %s1663 = smul.addr %s1662, 128
          %s1664 = scalar_lea.vmem [#allocation14], %s1663
          %1666 = dma.done %s1661, 2048
        $region88: #{_generator0_pallas.1} parent=83 // pred_fallthru
          _
      $region84: #{_generator0_pallas.1} parent=5 // pred_fallthru
        _
    $region6: #{_generator0_pallas.1} parent=1 // loop_footer
      %s28 = sadd.s32 1, %s24
    $region7: #{_generator0_pallas.1} parent=1 // loop_footer_branch
      %23 = sbr.rel target = $region3
    $region8: #{_generator0_pallas.1} parent=1 // loop_exit
      _
    %1667 = vsyncpa [#allocation4], 1
    %s1668 = scalar_lea.sflag [#allocation4], 1
    %1669 = vsyncpa %s1668, 1
    %1670 = vsyncpa [#allocation7], 1
    %1671 = vsyncpa [#allocation10], 1
    %1672 = vsyncpa [#allocation13], 1
    %s1673 = scalar_lea.sflag [#allocation13], 1
    %1674 = vsyncpa %s1673, 1
    %1675 = vsyncpa [#allocation5], 1
    %s1676 = scalar_lea.sflag [#allocation5], 1
    %1677 = vsyncpa %s1676, 1

</llo_original>
